<compile_context>
chip_gen: v7x
topology: tpu7x:2x2x1
jax: 0.10.0
libtpu: 0.0.40
codegen_flags: <defaults>
</compile_context>

<pallas_src>
import functools
import math

import jax
import jax.numpy as jnp
from jax.experimental import pallas as pl
from jax.experimental.pallas import tpu as pltpu


def _round_up(x, m):
    return ((x + m - 1) // m) * m


def _vmem_budget_bytes():
    """Scoped-VMEM budget: ~3/4 of physical, capped at 100 MiB.
    -> ~96 MiB on v5e/v6e (128 MiB phys), ~48 MiB on v7x (64 MiB phys)."""
    cap = 64 * 1024 * 1024
    try:
        info = pltpu.get_tpu_info()
        cap = int(getattr(info, "vmem_capacity_bytes", cap))
    except Exception:
        pass
    return min((cap * 3) // 4, 100 * 1024 * 1024)


def _image_tile_rows(n_rows, d_in, Wp, Hp, depth, num_images, budget):
    """Width/depth-aware sample-tile size for the image-MLP kernel."""
    w_bytes = 2 * (d_in * Wp + depth * (Wp * Hp + Hp * Wp))      # resident bf16 weights
    b_bytes = 4 * (Wp + depth * (Hp + Wp))                       # resident f32 biases
    fixed = w_bytes + b_bytes + 3 * 4 * num_images * Wp          # f32 acc + output bufs
    per_row = (2 * 2 * d_in                                      # 2x-buffered bf16 samples
               + 2 * 4                                           # 2x-buffered int32 ids
               + 9 * (Wp + Hp)                                   # f32+bf16 activations (1.5x fudge)
               + 4 * num_images)                                 # f32 onehot column
    avail = max(budget - fixed, 128 * per_row)
    t = min(avail // per_row, 2048, _round_up(max(n_rows, 1), 128))
    return max((t // 128) * 128, 128)


def _head_tile_rows(n_rows, d_meta, num_img_pad, budget):
    """Tile size for the (folded, trivially cheap) scale head."""
    per_row = 2 * 4 * d_meta + 2 * 4 + 6 * num_img_pad + 16
    t = min(budget // per_row, 4096, _round_up(max(n_rows, 1), 128))
    return max((t // 128) * 128, 128)


# ----------------------------------------------------------------------------
# Parameter init (matches scramble Linear.reset_parameters):
#   trunc_normal(mean=0, std=sqrt(0.1/fan_avg), clip ±2*std), zero bias.
# Weights are stored as [in, out] so kernels compute x @ W (== x @ W_torch.T).
# ----------------------------------------------------------------------------
def _trunc_normal_linear(key, fan_in, fan_out):
    fan_avg = 0.5 * (fan_in + fan_out)
    std = math.sqrt(0.1 / fan_avg)
    w = jax.random.truncated_normal(key, -2.0, 2.0, (fan_in, fan_out), jnp.float32) * std
    b = jnp.zeros((1, fan_out), jnp.float32)
    return w, b


def init_params(key, width, depth, d_in, d_meta):
    keys = jax.random.split(key, 2 * depth + 3)
    ki = iter(keys)
    params = {}
    # image_model.mlp : Linear(width) then depth x FeedForward(width)
    params["w0"], params["b0"] = _trunc_normal_linear(next(ki), d_in, width)
    for d in range(depth):
        params[f"ff{d}_w1"], params[f"ff{d}_b1"] = _trunc_normal_linear(next(ki), width, 2 * width)
        params[f"ff{d}_w2"], params[f"ff{d}_b2"] = _trunc_normal_linear(next(ki), 2 * width, width)
    # scaling head
    params["w_in"], params["b_in"] = _trunc_normal_linear(next(ki), d_meta, width)
    params["w_out"], params["b_out"] = _trunc_normal_linear(next(ki), width, 1)
    return params


# ----------------------------------------------------------------------------
# Kernel 1: ImageModel hot path.
#   Grid = (core_splits, tiles_per_split): leading "parallel" axis splits the sample
#   tiles across TensorCores on v7x; trailing "arbitrary" axis is the S reduction.
#   Each tile: samples [TILE_S, D_in] -> MLP (input Linear + depth FeedForward blocks,
#   bf16 MXU inputs / f32 accumulation) -> f32 per-image segment sum via
#   onehot[num_images, TILE_S] @ h (pre-transposed, no lhs transpose) -> f32 scratch.
#   The per-core partial sums are emitted raw; the wrapper sums them and divides by the
#   static sample_size (matching the torch reference).
# ----------------------------------------------------------------------------
def make_image_mlp_kernel(depth, num_images):
    def kernel(samples_ref, ids_ref, w0_ref, b0_ref, *rest):
        out_ref, acc_ref = rest[-2], rest[-1]
        ff = rest[:-2]  # 4 refs per FeedForward block
        s = pl.program_id(1)

        @pl.when(s == 0)
        def _init():
            acc_ref[...] = jnp.zeros_like(acc_ref)

        # MLP input layer (bf16 matmul inputs, f32 accumulation / elementwise).
        h = jnp.dot(samples_ref[...], w0_ref[...],
                    preferred_element_type=jnp.float32) + b0_ref[...]

        # FeedForward: relu -> Linear(2w) -> relu -> Linear(w) -> + residual
        for d in range(depth):
            w1, b1, w2, b2 = ff[4 * d:4 * d + 4]
            a = jnp.maximum(h, 0.0).astype(jnp.bfloat16)
            a = jnp.dot(a, w1[...], preferred_element_type=jnp.float32) + b1[...]
            a = jnp.maximum(a, 0.0).astype(jnp.bfloat16)
            a = jnp.dot(a, w2[...], preferred_element_type=jnp.float32) + b2[...]
            h = h + a

        # sum_images: pre-transposed one-hot [num_images, TILE_S] @ h, kept f32 (padded
        # sample rows carry id == num_images, so their one-hot column is all zero).
        # TODO(synk): for num_images >~ few hundred, sort samples by image id in the
        # wrapper and do contiguous per-image block reductions instead of the onehot.
        ids = ids_ref[...]                                          # [1, TILE_S] int32
        tile_s = ids.shape[1]
        onehot = (jax.lax.broadcasted_iota(jnp.int32, (num_images, tile_s), 0)
                  == ids).astype(jnp.float32)                       # [num_images, TILE_S]
        acc_ref[...] += jnp.dot(onehot, h, preferred_element_type=jnp.float32)

        @pl.when(s == pl.num_programs(1) - 1)
        def _finalize():
            out_ref[...] = acc_ref[...][None, :, :]

    return kernel


# ----------------------------------------------------------------------------
# Kernel 2: folded scale head (purely linear, so linear_in/linear_out are folded into
#   precomputed projections in the wrapper). Per point-row tile:
#     out[n] = metadata[n,:] @ w_eff + reps_proj[image_id[n]] + b_eff
#   emitted as a lane-dense [1, TILE_N] row block; the gather over the tiny
#   [num_images, 1] projection is a VPU onehot select-sum.
# ----------------------------------------------------------------------------
def scale_head_kernel(meta_ref, ids_ref, w_eff_ref, reps_ref, b_ref, out_ref):
    # [1, d_meta] contracted against metadata's d_meta axis -> lane-dense [1, TILE_N].
    lin = jax.lax.dot_general(w_eff_ref[...], meta_ref[...],
                              (((1,), (1,)), ((), ())),
                              preferred_element_type=jnp.float32)
    ids = ids_ref[...]                                              # [1, TILE_N] int32
    ni = reps_ref.shape[0]
    onehot = (jax.lax.broadcasted_iota(jnp.int32, (ni, ids.shape[1]), 0)
              == ids).astype(jnp.float32)                           # [ni, TILE_N]
    gathered = jnp.sum(onehot * reps_ref[...], axis=0, keepdims=True)   # reps_proj[id]
    out_ref[...] = lin + gathered + b_ref[...]


# ----------------------------------------------------------------------------
# Full forward pass (glue: concat, sampling, padding, two pallas_calls) under jit.
# ----------------------------------------------------------------------------
@functools.partial(jax.jit,
                   static_argnames=("width", "depth", "num_images", "sample_size"))
def scaling_model_forward(params, Imodel, Iobs, image_id, metadata, sample_key,
                          *, width, depth, num_images, sample_size):
    n_points, d_meta = metadata.shape
    d_in = Imodel.shape[-1] + Iobs.shape[-1] + d_meta
    # Note: Wp stays at a 128 multiple; padding width<=128 up to 256 only adds wasted
    # MXU work even on 256-wide MXUs (v6e/v7x), so no extra alignment is applied.
    Wp = _round_up(width, 128)        # lane-dense padded model width
    Hp = _round_up(2 * width, 128)    # padded FeedForward hidden width
    vmem_budget = _vmem_budget_bytes()

    # --- pad + bf16-cast weights (zero padding is exact: padded columns stay zero) ---
    def pad_w(w, r, c):
        return jnp.pad(w, ((0, r - w.shape[0]), (0, c - w.shape[1]))).astype(jnp.bfloat16)

    def pad_b(b, c):  # biases stay f32 (added post-matmul on the VPU)
        return jnp.pad(b, ((0, 0), (0, c - b.shape[1])))

    w0, b0 = pad_w(params["w0"], d_in, Wp), pad_b(params["b0"], Wp)
    ff_args = []
    for d in range(depth):
        ff_args += [pad_w(params[f"ff{d}_w1"], Wp, Hp), pad_b(params[f"ff{d}_b1"], Hp),
                    pad_w(params[f"ff{d}_w2"], Hp, Wp), pad_b(params[f"ff{d}_b2"], Wp)]

    # --- ImageModel.sample_idx: p_i = 1/(counts[id_i]*num_images); multinomial w/o
    #     replacement == top_k(log p + Gumbel noise). ---
    n_samples = num_images * sample_size
    assert n_samples <= n_points, (
        "num_images*sample_size must be <= number of points "
        "(multinomial without replacement)")
    image_data = jnp.concatenate([Imodel, Iobs, metadata], axis=-1)
    counts = jnp.bincount(image_id, length=num_images)
    p = 1.0 / (counts[image_id].astype(jnp.float32) * num_images)
    gumbel = jax.random.gumbel(sample_key, image_id.shape, jnp.float32)
    _, idx = jax.lax.top_k(jnp.log(p) + gumbel, n_samples)

    # --- width/depth-aware sample tiling + optional 2-way core split (v7x megacore) ---
    tile_s = _image_tile_rows(n_samples, d_in, Wp, Hp, depth, num_images, vmem_budget)
    n_tiles = int(pl.cdiv(max(n_samples, 1), tile_s))
    core_splits = 2 if n_tiles >= 2 else 1
    n_tiles = _round_up(n_tiles, core_splits)
    tiles_per_split = n_tiles // core_splits
    s_pad = n_tiles * tile_s

    samples = jnp.zeros((s_pad, d_in), jnp.bfloat16
                        ).at[:n_samples].set(image_data[idx].astype(jnp.bfloat16))
    sampled_ids = jnp.full((1, s_pad), num_images, jnp.int32
                           ).at[0, :n_samples].set(image_id[idx].astype(jnp.int32))

    flops_img = 2 * s_pad * (d_in * Wp + 2 * depth * Wp * Hp + num_images * Wp)
    bytes_img = (s_pad * d_in * 2 + s_pad * 4
                 + 2 * (d_in * Wp + depth * (Wp * Hp + Hp * Wp))
                 + 4 * (Wp + depth * (Hp + Wp))
                 + core_splits * num_images * Wp * 4)

    # TODO(synk): for very large width*depth on v7x (resident FF weights approaching the
    # ~48 MiB scoped budget) stream per-layer weights via a depth grid axis / emit_pipeline.
    partials = pl.pallas_call(
        make_image_mlp_kernel(depth, num_images),
        out_shape=jax.ShapeDtypeStruct((core_splits, num_images, Wp), jnp.float32),
        grid=(core_splits, tiles_per_split),
        in_specs=[pl.BlockSpec((tile_s, d_in),
                               lambda c, s: (c * tiles_per_split + s, 0)),
                  pl.BlockSpec((1, tile_s),
                               lambda c, s: (0, c * tiles_per_split + s))]
                 + [pl.BlockSpec(memory_space=pltpu.MemorySpace.VMEM)] * (2 + 4 * depth),
        out_specs=pl.BlockSpec((1, num_images, Wp), lambda c, s: (c, 0, 0)),
        scratch_shapes=[pltpu.VMEM((num_images, Wp), jnp.float32)],
        compiler_params=pltpu.CompilerParams(
            dimension_semantics=("parallel", "arbitrary"),   # core split / S reduction
            vmem_limit_bytes=vmem_budget),
        cost_estimate=pl.CostEstimate(flops=flops_img, transcendentals=0,
                                      bytes_accessed=bytes_img),
    )(samples, sampled_ids, w0, b0, *ff_args)

    # per-image mean over the static sample_size (matches torch: sum_images(...) / sample_size)
    image_reps = jnp.sum(partials, axis=0) * (1.0 / sample_size)    # [num_images, Wp] f32

    # --- folded scale head: linear_out(linear_in(meta) + reps[id])
    #     == meta @ (w_in @ w_out) + (reps @ w_out)[id] + (b_in @ w_out + b_out) ---
    w_out = params["w_out"]                                         # [width, 1] f32
    w_eff_row = (params["w_in"] @ w_out).T                          # [1, d_meta] f32
    b_eff = params["b_in"] @ w_out + params["b_out"]                # [1, 1] f32
    reps_proj = image_reps[:, :width] @ w_out                       # [num_images, 1] f32
    num_img_pad = _round_up(max(num_images, 1), 8)
    reps_proj_pad = jnp.zeros((num_img_pad, 1), jnp.float32).at[:num_images].set(reps_proj)

    tile_n = _head_tile_rows(n_points, d_meta, num_img_pad, vmem_budget)
    n_pad = _round_up(n_points, tile_n)
    meta_p = jnp.zeros((n_pad, d_meta), jnp.float32
                       ).at[:n_points].set(metadata.astype(jnp.float32))
    ids_row = jnp.full((1, n_pad), num_images, jnp.int32
                       ).at[0, :n_points].set(image_id.astype(jnp.int32))

    out_row = pl.pallas_call(
        scale_head_kernel,
        out_shape=jax.ShapeDtypeStruct((1, n_pad), jnp.float32),    # lane-dense output slab
        grid=(n_pad // tile_n,),
        in_specs=[pl.BlockSpec((tile_n, d_meta), lambda i: (i, 0)),
                  pl.BlockSpec((1, tile_n), lambda i: (0, i))]
                 + [pl.BlockSpec(memory_space=pltpu.MemorySpace.VMEM)] * 3,
        out_specs=pl.BlockSpec((1, tile_n), lambda i: (0, i)),
        compiler_params=pltpu.CompilerParams(
            dimension_semantics=("parallel",),           # independent rows -> megacore
            vmem_limit_bytes=vmem_budget),
    )(meta_p, ids_row, w_eff_row, reps_proj_pad, b_eff)

    return out_row[0, :n_points][:, None]                           # [N, 1] f32


if __name__ == "__main__":
    key = jax.random.PRNGKey(0)
    width, depth = 32, 2
    num_images, pts_per_image = 4, 16
    n_points = num_images * pts_per_image        # 64 pixels/points total
    d_model, d_obs, d_meta = 1, 1, 6             # image_data dim = 8
    sample_size = 8                              # S = num_images * sample_size = 32

    k_im, k_ob, k_meta, k_param, k_sample = jax.random.split(key, 5)
    Imodel = jax.random.normal(k_im, (n_points, d_model), jnp.float32)
    Iobs = jax.random.normal(k_ob, (n_points, d_obs), jnp.float32)
    metadata = jax.random.normal(k_meta, (n_points, d_meta), jnp.float32)
    image_id = jnp.repeat(jnp.arange(num_images, dtype=jnp.int32), pts_per_image)

    params = init_params(k_param, width, depth,
                         d_in=d_model + d_obs + d_meta, d_meta=d_meta)

    out = scaling_model_forward(params, Imodel, Iobs, image_id, metadata, k_sample,
                                width=width, depth=depth,
                                num_images=num_images, sample_size=sample_size)
    out = jax.block_until_ready(out)
    assert out.shape == (n_points, 1) and out.dtype == jnp.float32
    assert bool(jnp.all(jnp.isfinite(out)))
    print("KERNEL_OK")
</pallas_src>

<mosaic_0001>
module attributes {stable_mosaic.version = 11 : i64} {
  func.func private @main(%arg0: i32) attributes {dimension_semantics = [#tpu.dimension_semantics<core_parallel>], iteration_bounds = array<i64: 2>, tpu.core_type = #tpu.core_type<sc_scalar_subcore>, window_params = []} {
    return
  }
}

module attributes {stable_mosaic.version = 11 : i64} {
  func.func private @main(%arg0: i32) attributes {dimension_semantics = [#tpu.dimension_semantics<core_parallel>], iteration_bounds = array<i64: 2>, tpu.core_type = #tpu.core_type<sc_scalar_subcore>, window_params = []} {
    return
  }
}

module attributes {stable_mosaic.version = 11 : i64} {
  func.func @kernel(%arg0: i32, %arg1: i32, %arg2: memref<128x8xbf16, #tpu.memory_space<vmem>>, %arg3: memref<1x128xi32, #tpu.memory_space<vmem>>, %arg4: memref<8x128xbf16, #tpu.memory_space<vmem>>, %arg5: memref<1x128xf32, #tpu.memory_space<vmem>>, %arg6: memref<128x128xbf16, #tpu.memory_space<vmem>>, %arg7: memref<1x128xf32, #tpu.memory_space<vmem>>, %arg8: memref<128x128xbf16, #tpu.memory_space<vmem>>, %arg9: memref<1x128xf32, #tpu.memory_space<vmem>>, %arg10: memref<128x128xbf16, #tpu.memory_space<vmem>>, %arg11: memref<1x128xf32, #tpu.memory_space<vmem>>, %arg12: memref<128x128xbf16, #tpu.memory_space<vmem>>, %arg13: memref<1x128xf32, #tpu.memory_space<vmem>>, %arg14: memref<1x4x128xf32, #tpu.memory_space<vmem>>, %arg15: memref<4x128xf32, #tpu.memory_space<vmem>>) attributes {dimension_semantics = [#tpu.dimension_semantics<parallel>, #tpu.dimension_semantics<arbitrary>], iteration_bounds = array<i64: 1, 1>, scalar_prefetch = 0 : i64, scratch_operands = 1 : i64, tpu.core_type = #tpu.core_type<tc>, window_params = [{transform_indices = @transform_0, window_bounds = array<i64: 128, 8>}, {transform_indices = @transform_1, window_bounds = array<i64: 1, 128>}, {pipeline_mode = #tpu.pipeline_mode<synchronous>, transform_indices = @transform_2, window_bounds = array<i64: 8, 128>}, {pipeline_mode = #tpu.pipeline_mode<synchronous>, transform_indices = @transform_3, window_bounds = array<i64: 1, 128>}, {pipeline_mode = #tpu.pipeline_mode<synchronous>, transform_indices = @transform_4, window_bounds = array<i64: 128, 128>}, {pipeline_mode = #tpu.pipeline_mode<synchronous>, transform_indices = @transform_5, window_bounds = array<i64: 1, 128>}, {pipeline_mode = #tpu.pipeline_mode<synchronous>, transform_indices = @transform_6, window_bounds = array<i64: 128, 128>}, {pipeline_mode = #tpu.pipeline_mode<synchronous>, transform_indices = @transform_7, window_bounds = array<i64: 1, 128>}, {pipeline_mode = #tpu.pipeline_mode<synchronous>, transform_indices = @transform_8, window_bounds = array<i64: 128, 128>}, {pipeline_mode = #tpu.pipeline_mode<synchronous>, transform_indices = @transform_9, window_bounds = array<i64: 1, 128>}, {pipeline_mode = #tpu.pipeline_mode<synchronous>, transform_indices = @transform_10, window_bounds = array<i64: 128, 128>}, {pipeline_mode = #tpu.pipeline_mode<synchronous>, transform_indices = @transform_11, window_bounds = array<i64: 1, 128>}, {transform_indices = @transform_12, window_bounds = array<i64: 1, 4, 128>}]} {
    %c0_i32 = arith.constant 0 : i32
    %0 = arith.cmpi eq, %arg1, %c0_i32 : i32
    %1 = arith.extui %0 : i1 to i32
    %c0_i32_0 = arith.constant 0 : i32
    %2 = arith.cmpi ne, %1, %c0_i32_0 : i32
    scf.if %2 {
      %cst_39 = arith.constant 0.000000e+00 : f32
      %56 = vector.broadcast %cst_39 : f32 to vector<4x128xf32>
      %c0_40 = arith.constant 0 : index
      %c0_41 = arith.constant 0 : index
      %57 = vector.load %arg15[%c0_40, %c0_41] : memref<4x128xf32, #tpu.memory_space<vmem>>, vector<4x128xf32>
      tpu.vector_store %arg15[%c0_40, %c0_41], %56 {strides = array<i32>} : memref<4x128xf32, #tpu.memory_space<vmem>>, vector<4x128xf32>,
    } else {
    }
    %c0 = arith.constant 0 : index
    %c0_1 = arith.constant 0 : index
    %3 = vector.load %arg2[%c0, %c0_1] : memref<128x8xbf16, #tpu.memory_space<vmem>>, vector<128x8xbf16>
    %c0_2 = arith.constant 0 : index
    %c0_3 = arith.constant 0 : index
    %4 = vector.load %arg4[%c0_2, %c0_3] : memref<8x128xbf16, #tpu.memory_space<vmem>>, vector<8x128xbf16>
    %cst = arith.constant dense<0.000000e+00> : vector<128x128xf32>
    %5 = tpu.matmul %3, %4, %cst {dimension_numbers = #tpu.dot_dimension_numbers<[1], [0], [0], [1], [0, 0, 1, 1], [], []>} : vector<128x8xbf16>, vector<8x128xbf16>, vector<128x128xf32> -> vector<128x128xf32>
    %c0_4 = arith.constant 0 : index
    %c0_5 = arith.constant 0 : index
    %6 = vector.load %arg5[%c0_4, %c0_5] : memref<1x128xf32, #tpu.memory_space<vmem>>, vector<1x128xf32>
    %7 = vector.broadcast %6 : vector<1x128xf32> to vector<128x128xf32>
    %8 = arith.addf %5, %7 : vector<128x128xf32>
    %cst_6 = arith.constant 0.000000e+00 : f32
    %9 = vector.broadcast %cst_6 : f32 to vector<128x128xf32>
    %10 = arith.maximumf %8, %9 : vector<128x128xf32>
    %11 = arith.truncf %10 : vector<128x128xf32> to vector<128x128xbf16>
    %c0_7 = arith.constant 0 : index
    %c0_8 = arith.constant 0 : index
    %12 = vector.load %arg6[%c0_7, %c0_8] : memref<128x128xbf16, #tpu.memory_space<vmem>>, vector<128x128xbf16>
    %cst_9 = arith.constant dense<0.000000e+00> : vector<128x128xf32>
    %13 = tpu.matmul %11, %12, %cst_9 {dimension_numbers = #tpu.dot_dimension_numbers<[1], [0], [0], [1], [0, 0, 1, 1], [], []>} : vector<128x128xbf16>, vector<128x128xbf16>, vector<128x128xf32> -> vector<128x128xf32>
    %c0_10 = arith.constant 0 : index
    %c0_11 = arith.constant 0 : index
    %14 = vector.load %arg7[%c0_10, %c0_11] : memref<1x128xf32, #tpu.memory_space<vmem>>, vector<1x128xf32>
    %15 = vector.broadcast %14 : vector<1x128xf32> to vector<128x128xf32>
    %16 = arith.addf %13, %15 : vector<128x128xf32>
    %cst_12 = arith.constant 0.000000e+00 : f32
    %17 = vector.broadcast %cst_12 : f32 to vector<128x128xf32>
    %18 = arith.maximumf %16, %17 : vector<128x128xf32>
    %19 = arith.truncf %18 : vector<128x128xf32> to vector<128x128xbf16>
    %c0_13 = arith.constant 0 : index
    %c0_14 = arith.constant 0 : index
    %20 = vector.load %arg8[%c0_13, %c0_14] : memref<128x128xbf16, #tpu.memory_space<vmem>>, vector<128x128xbf16>
    %cst_15 = arith.constant dense<0.000000e+00> : vector<128x128xf32>
    %21 = tpu.matmul %19, %20, %cst_15 {dimension_numbers = #tpu.dot_dimension_numbers<[1], [0], [0], [1], [0, 0, 1, 1], [], []>} : vector<128x128xbf16>, vector<128x128xbf16>, vector<128x128xf32> -> vector<128x128xf32>
    %c0_16 = arith.constant 0 : index
    %c0_17 = arith.constant 0 : index
    %22 = vector.load %arg9[%c0_16, %c0_17] : memref<1x128xf32, #tpu.memory_space<vmem>>, vector<1x128xf32>
    %23 = vector.broadcast %22 : vector<1x128xf32> to vector<128x128xf32>
    %24 = arith.addf %21, %23 : vector<128x128xf32>
    %25 = arith.addf %8, %24 : vector<128x128xf32>
    %cst_18 = arith.constant 0.000000e+00 : f32
    %26 = vector.broadcast %cst_18 : f32 to vector<128x128xf32>
    %27 = arith.maximumf %25, %26 : vector<128x128xf32>
    %28 = arith.truncf %27 : vector<128x128xf32> to vector<128x128xbf16>
    %c0_19 = arith.constant 0 : index
    %c0_20 = arith.constant 0 : index
    %29 = vector.load %arg10[%c0_19, %c0_20] : memref<128x128xbf16, #tpu.memory_space<vmem>>, vector<128x128xbf16>
    %cst_21 = arith.constant dense<0.000000e+00> : vector<128x128xf32>
    %30 = tpu.matmul %28, %29, %cst_21 {dimension_numbers = #tpu.dot_dimension_numbers<[1], [0], [0], [1], [0, 0, 1, 1], [], []>} : vector<128x128xbf16>, vector<128x128xbf16>, vector<128x128xf32> -> vector<128x128xf32>
    %c0_22 = arith.constant 0 : index
    %c0_23 = arith.constant 0 : index
    %31 = vector.load %arg11[%c0_22, %c0_23] : memref<1x128xf32, #tpu.memory_space<vmem>>, vector<1x128xf32>
    %32 = vector.broadcast %31 : vector<1x128xf32> to vector<128x128xf32>
    %33 = arith.addf %30, %32 : vector<128x128xf32>
    %cst_24 = arith.constant 0.000000e+00 : f32
    %34 = vector.broadcast %cst_24 : f32 to vector<128x128xf32>
    %35 = arith.maximumf %33, %34 : vector<128x128xf32>
    %36 = arith.truncf %35 : vector<128x128xf32> to vector<128x128xbf16>
    %c0_25 = arith.constant 0 : index
    %c0_26 = arith.constant 0 : index
    %37 = vector.load %arg12[%c0_25, %c0_26] : memref<128x128xbf16, #tpu.memory_space<vmem>>, vector<128x128xbf16>
    %cst_27 = arith.constant dense<0.000000e+00> : vector<128x128xf32>
    %38 = tpu.matmul %36, %37, %cst_27 {dimension_numbers = #tpu.dot_dimension_numbers<[1], [0], [0], [1], [0, 0, 1, 1], [], []>} : vector<128x128xbf16>, vector<128x128xbf16>, vector<128x128xf32> -> vector<128x128xf32>
    %c0_28 = arith.constant 0 : index
    %c0_29 = arith.constant 0 : index
    %39 = vector.load %arg13[%c0_28, %c0_29] : memref<1x128xf32, #tpu.memory_space<vmem>>, vector<1x128xf32>
    %40 = vector.broadcast %39 : vector<1x128xf32> to vector<128x128xf32>
    %41 = arith.addf %38, %40 : vector<128x128xf32>
    %42 = arith.addf %25, %41 : vector<128x128xf32>
    %c0_30 = arith.constant 0 : index
    %c0_31 = arith.constant 0 : index
    %43 = vector.load %arg3[%c0_30, %c0_31] : memref<1x128xi32, #tpu.memory_space<vmem>>, vector<1x128xi32>
    %44 = tpu.iota {dimensions = array<i32: 0>} : vector<4x128xi32>
    %45 = vector.broadcast %43 : vector<1x128xi32> to vector<4x128xi32>
    %46 = arith.cmpi eq, %44, %45 : vector<4x128xi32>
    %47 = arith.extui %46 : vector<4x128xi1> to vector<4x128xi32>
    %48 = arith.sitofp %47 : vector<4x128xi32> to vector<4x128xf32>
    %c0_32 = arith.constant 0 : index
    %c0_33 = arith.constant 0 : index
    %49 = vector.load %arg15[%c0_32, %c0_33] : memref<4x128xf32, #tpu.memory_space<vmem>>, vector<4x128xf32>
    %cst_34 = arith.constant dense<0.000000e+00> : vector<4x128xf32>
    %50 = tpu.matmul %48, %42, %cst_34 {dimension_numbers = #tpu.dot_dimension_numbers<[1], [0], [0], [1], [0, 0, 1, 1], [], []>} : vector<4x128xf32>, vector<128x128xf32>, vector<4x128xf32> -> vector<4x128xf32>
    %51 = arith.addf %49, %50 : vector<4x128xf32>
    %c0_35 = arith.constant 0 : index
    %c0_36 = arith.constant 0 : index
    %52 = vector.load %arg15[%c0_35, %c0_36] : memref<4x128xf32, #tpu.memory_space<vmem>>, vector<4x128xf32>
    tpu.vector_store %arg15[%c0_35, %c0_36], %51 {strides = array<i32>} : memref<4x128xf32, #tpu.memory_space<vmem>>, vector<4x128xf32>,
    %c0_i32_37 = arith.constant 0 : i32
    %53 = arith.cmpi eq, %arg1, %c0_i32_37 : i32
    %54 = arith.extui %53 : i1 to i32
    %c0_i32_38 = arith.constant 0 : i32
    %55 = arith.cmpi ne, %54, %c0_i32_38 : i32
    scf.if %55 {
      %c0_39 = arith.constant 0 : index
      %c0_40 = arith.constant 0 : index
      %56 = vector.load %arg15[%c0_39, %c0_40] : memref<4x128xf32, #tpu.memory_space<vmem>>, vector<4x128xf32>
      %57 = vector.shape_cast %56 : vector<4x128xf32> to vector<1x4x128xf32>
      %c0_41 = arith.constant 0 : index
      %c0_42 = arith.constant 0 : index
      %c0_43 = arith.constant 0 : index
      %58 = vector.load %arg14[%c0_41, %c0_42, %c0_43] : memref<1x4x128xf32, #tpu.memory_space<vmem>>, vector<1x4x128xf32>
      tpu.vector_store %arg14[%c0_41, %c0_42, %c0_43], %57 {strides = array<i32>} : memref<1x4x128xf32, #tpu.memory_space<vmem>>, vector<1x4x128xf32>,
    } else {
    }
    return
  }
  func.func @transform_0(%arg0: i32, %arg1: i32) -> (i32, i32) {
    %c1_i32 = arith.constant 1 : i32
    %0 = arith.muli %arg0, %c1_i32 : i32
    %1 = arith.addi %0, %arg1 : i32
    %c0_i32 = arith.constant 0 : i32
    %c0_i32_0 = arith.constant 0 : i32
    return %1, %c0_i32 : i32, i32
  }
  func.func @transform_1(%arg0: i32, %arg1: i32) -> (i32, i32) {
    %c1_i32 = arith.constant 1 : i32
    %0 = arith.muli %arg0, %c1_i32 : i32
    %1 = arith.addi %0, %arg1 : i32
    %c0_i32 = arith.constant 0 : i32
    %c0_i32_0 = arith.constant 0 : i32
    return %c0_i32, %1 : i32, i32
  }
  func.func @transform_2(%arg0: i32, %arg1: i32) -> (i32, i32) {
    %c0_i32 = arith.constant 0 : i32
    %c0_i32_0 = arith.constant 0 : i32
    %c0_i32_1 = arith.constant 0 : i32
    return %c0_i32, %c0_i32_0 : i32, i32
  }
  func.func @transform_3(%arg0: i32, %arg1: i32) -> (i32, i32) {
    %c0_i32 = arith.constant 0 : i32
    %c0_i32_0 = arith.constant 0 : i32
    %c0_i32_1 = arith.constant 0 : i32
    return %c0_i32, %c0_i32_0 : i32, i32
  }
  func.func @transform_4(%arg0: i32, %arg1: i32) -> (i32, i32) {
    %c0_i32 = arith.constant 0 : i32
    %c0_i32_0 = arith.constant 0 : i32
    %c0_i32_1 = arith.constant 0 : i32
    return %c0_i32, %c0_i32_0 : i32, i32
  }
  func.func @transform_5(%arg0: i32, %arg1: i32) -> (i32, i32) {
    %c0_i32 = arith.constant 0 : i32
    %c0_i32_0 = arith.constant 0 : i32
    %c0_i32_1 = arith.constant 0 : i32
    return %c0_i32, %c0_i32_0 : i32, i32
  }
  func.func @transform_6(%arg0: i32, %arg1: i32) -> (i32, i32) {
    %c0_i32 = arith.constant 0 : i32
    %c0_i32_0 = arith.constant 0 : i32
    %c0_i32_1 = arith.constant 0 : i32
    return %c0_i32, %c0_i32_0 : i32, i32
  }
  func.func @transform_7(%arg0: i32, %arg1: i32) -> (i32, i32) {
    %c0_i32 = arith.constant 0 : i32
    %c0_i32_0 = arith.constant 0 : i32
    %c0_i32_1 = arith.constant 0 : i32
    return %c0_i32, %c0_i32_0 : i32, i32
  }
  func.func @transform_8(%arg0: i32, %arg1: i32) -> (i32, i32) {
    %c0_i32 = arith.constant 0 : i32
    %c0_i32_0 = arith.constant 0 : i32
    %c0_i32_1 = arith.constant 0 : i32
    return %c0_i32, %c0_i32_0 : i32, i32
  }
  func.func @transform_9(%arg0: i32, %arg1: i32) -> (i32, i32) {
    %c0_i32 = arith.constant 0 : i32
    %c0_i32_0 = arith.constant 0 : i32
    %c0_i32_1 = arith.constant 0 : i32
    return %c0_i32, %c0_i32_0 : i32, i32
  }
  func.func @transform_10(%arg0: i32, %arg1: i32) -> (i32, i32) {
    %c0_i32 = arith.constant 0 : i32
    %c0_i32_0 = arith.constant 0 : i32
    %c0_i32_1 = arith.constant 0 : i32
    return %c0_i32, %c0_i32_0 : i32, i32
  }
  func.func @transform_11(%arg0: i32, %arg1: i32) -> (i32, i32) {
    %c0_i32 = arith.constant 0 : i32
    %c0_i32_0 = arith.constant 0 : i32
    %c0_i32_1 = arith.constant 0 : i32
    return %c0_i32, %c0_i32_0 : i32, i32
  }
  func.func @transform_12(%arg0: i32, %arg1: i32) -> (i32, i32, i32) {
    %c0_i32 = arith.constant 0 : i32
    %c0_i32_0 = arith.constant 0 : i32
    %c0_i32_1 = arith.constant 0 : i32
    return %arg0, %c0_i32, %c0_i32_0 : i32, i32, i32
  }
}

module attributes {stable_mosaic.version = 11 : i64} {
  func.func @scale_head_kernel(%arg0: i32, %arg1: memref<128x6xf32, #tpu.memory_space<vmem>>, %arg2: memref<1x128xi32, #tpu.memory_space<vmem>>, %arg3: memref<1x6xf32, #tpu.memory_space<vmem>>, %arg4: memref<8x1xf32, #tpu.memory_space<vmem>>, %arg5: memref<1x1xf32, #tpu.memory_space<vmem>>, %arg6: memref<1x128xf32, #tpu.memory_space<vmem>>) attributes {dimension_semantics = [#tpu.dimension_semantics<parallel>], iteration_bounds = array<i64: 1>, scalar_prefetch = 0 : i64, scratch_operands = 0 : i64, tpu.core_type = #tpu.core_type<tc>, window_params = [{transform_indices = @transform_0, window_bounds = array<i64: 128, 6>}, {transform_indices = @transform_1, window_bounds = array<i64: 1, 128>}, {pipeline_mode = #tpu.pipeline_mode<synchronous>, transform_indices = @transform_2, window_bounds = array<i64: 1, 6>}, {pipeline_mode = #tpu.pipeline_mode<synchronous>, transform_indices = @transform_3, window_bounds = array<i64: 8, 1>}, {pipeline_mode = #tpu.pipeline_mode<synchronous>, transform_indices = @transform_4, window_bounds = array<i64: 1, 1>}, {transform_indices = @transform_5, window_bounds = array<i64: 1, 128>}]} {
    %c0 = arith.constant 0 : index
    %c0_0 = arith.constant 0 : index
    %0 = vector.load %arg3[%c0, %c0_0] : memref<1x6xf32, #tpu.memory_space<vmem>>, vector<1x6xf32>
    %c0_1 = arith.constant 0 : index
    %c0_2 = arith.constant 0 : index
    %1 = vector.load %arg1[%c0_1, %c0_2] : memref<128x6xf32, #tpu.memory_space<vmem>>, vector<128x6xf32>
    %cst = arith.constant dense<0.000000e+00> : vector<1x128xf32>
    %2 = tpu.matmul %0, %1, %cst {dimension_numbers = #tpu.dot_dimension_numbers<[1], [1], [0], [0], [0, 0, 1, 0], [], []>} : vector<1x6xf32>, vector<128x6xf32>, vector<1x128xf32> -> vector<1x128xf32>
    %c0_3 = arith.constant 0 : index
    %c0_4 = arith.constant 0 : index
    %3 = vector.load %arg2[%c0_3, %c0_4] : memref<1x128xi32, #tpu.memory_space<vmem>>, vector<1x128xi32>
    %4 = tpu.iota {dimensions = array<i32: 0>} : vector<8x128xi32>
    %5 = vector.broadcast %3 : vector<1x128xi32> to vector<8x128xi32>
    %6 = arith.cmpi eq, %4, %5 : vector<8x128xi32>
    %7 = arith.extui %6 : vector<8x128xi1> to vector<8x128xi32>
    %8 = arith.sitofp %7 : vector<8x128xi32> to vector<8x128xf32>
    %c0_5 = arith.constant 0 : index
    %c0_6 = arith.constant 0 : index
    %9 = vector.load %arg4[%c0_5, %c0_6] : memref<8x1xf32, #tpu.memory_space<vmem>>, vector<8x1xf32>
    %10 = vector.broadcast %9 : vector<8x1xf32> to vector<8x128xf32>
    %11 = arith.mulf %8, %10 : vector<8x128xf32>
    %cst_7 = arith.constant dense<0.000000e+00> : vector<128xf32>
    %12 = vector.multi_reduction <add>, %11, %cst_7 [0] : vector<8x128xf32> to vector<128xf32>
    %13 = vector.shape_cast %12 : vector<128xf32> to vector<1x128xf32>
    %14 = arith.addf %2, %13 : vector<1x128xf32>
    %c0_8 = arith.constant 0 : index
    %c0_9 = arith.constant 0 : index
    %15 = vector.load %arg5[%c0_8, %c0_9] : memref<1x1xf32, #tpu.memory_space<vmem>>, vector<1x1xf32>
    %16 = vector.broadcast %15 : vector<1x1xf32> to vector<1x128xf32>
    %17 = arith.addf %14, %16 : vector<1x128xf32>
    %c0_10 = arith.constant 0 : index
    %c0_11 = arith.constant 0 : index
    %18 = vector.load %arg6[%c0_10, %c0_11] : memref<1x128xf32, #tpu.memory_space<vmem>>, vector<1x128xf32>
    tpu.vector_store %arg6[%c0_10, %c0_11], %17 {strides = array<i32>} : memref<1x128xf32, #tpu.memory_space<vmem>>, vector<1x128xf32>,
    return
  }
  func.func @transform_0(%arg0: i32) -> (i32, i32) {
    %c0_i32 = arith.constant 0 : i32
    %c0_i32_0 = arith.constant 0 : i32
    return %arg0, %c0_i32 : i32, i32
  }
  func.func @transform_1(%arg0: i32) -> (i32, i32) {
    %c0_i32 = arith.constant 0 : i32
    %c0_i32_0 = arith.constant 0 : i32
    return %c0_i32, %arg0 : i32, i32
  }
  func.func @transform_2(%arg0: i32) -> (i32, i32) {
    %c0_i32 = arith.constant 0 : i32
    %c0_i32_0 = arith.constant 0 : i32
    %c0_i32_1 = arith.constant 0 : i32
    return %c0_i32, %c0_i32_0 : i32, i32
  }
  func.func @transform_3(%arg0: i32) -> (i32, i32) {
    %c0_i32 = arith.constant 0 : i32
    %c0_i32_0 = arith.constant 0 : i32
    %c0_i32_1 = arith.constant 0 : i32
    return %c0_i32, %c0_i32_0 : i32, i32
  }
  func.func @transform_4(%arg0: i32) -> (i32, i32) {
    %c0_i32 = arith.constant 0 : i32
    %c0_i32_0 = arith.constant 0 : i32
    %c0_i32_1 = arith.constant 0 : i32
    return %c0_i32, %c0_i32_0 : i32, i32
  }
  func.func @transform_5(%arg0: i32) -> (i32, i32) {
    %c0_i32 = arith.constant 0 : i32
    %c0_i32_0 = arith.constant 0 : i32
    return %c0_i32, %arg0 : i32, i32
  }
}

</mosaic_0001>

<llo_original>
// kernel: scaling_model_forward.2
$region0: #{scaling_model_forward.2}
  #allocation0 [shape = 'u32[]', space=smem, size = 0x4, offset = 0x4, fixed_abs, tag = 'smem constant byte address 0x4 - core index']
  #allocation1 [shape = 'u32[144,128]{1,0:T(1,128)}', space=vmem, size = 0x12000, scoped, tag = 'internal scratch']
  #allocation2 [shape = 'f32[4,128]{1,0:T(4,128)}', space=vmem, size = 0x800, scoped, tag = 'scratch operand']
  %s0 = inlined_call_operand.vmem [shape: bf16[128,8], index: 0, kind: input, shape index: {}]
  %s1 = inlined_call_operand.vmem [shape: s32[1,128], index: 1, kind: input, shape index: {}]
  %s2 = inlined_call_operand.vmem [shape: bf16[8,128], index: 2, kind: input, shape index: {}]
  %s3 = inlined_call_operand.vmem [shape: f32[1,128], index: 3, kind: input, shape index: {}]
  %s4 = inlined_call_operand.vmem [shape: bf16[128,128], index: 4, kind: input, shape index: {}]
  %s5 = inlined_call_operand.vmem [shape: f32[1,128], index: 5, kind: input, shape index: {}]
  %s6 = inlined_call_operand.vmem [shape: bf16[128,128], index: 6, kind: input, shape index: {}]
  %s7 = inlined_call_operand.vmem [shape: f32[1,128], index: 7, kind: input, shape index: {}]
  %s8 = inlined_call_operand.vmem [shape: bf16[128,128], index: 8, kind: input, shape index: {}]
  %s9 = inlined_call_operand.vmem [shape: f32[1,128], index: 9, kind: input, shape index: {}]
  %s10 = inlined_call_operand.vmem [shape: bf16[128,128], index: 10, kind: input, shape index: {}]
  %s11 = inlined_call_operand.vmem [shape: f32[1,128], index: 11, kind: input, shape index: {}]
  %s12 = inlined_call_operand.vmem [shape: f32[1,4,128], index: 12, kind: output, shape index: {}]
  %s13 = sld [smem:[#allocation0]]
  $region66: #{scaling_model_forward.2} parent=0
    _
  %s15 = ssub.s32 1, %s13
  %s16 = scalar_select 0, %s15, %s13
  // Predicated region
  $region2: #{scaling_model_forward.2} parent=0 // pred_check
    _
  $region3: #{scaling_model_forward.2} parent=0 // pred_check_branch
    %18 = sbr.rel (0) target = $region5
  $region4: #{scaling_model_forward.2} parent=0 // pred_region
    %s19 = sadd.s32 0, 0
    %s20 = smul.u32 16, %s19
    %p21 = scmp.lt.s32.totalorder %s20, 15
    %s22 = scalar_select %p21, %s20, 15
    %s23 = smul.addr %s22, 4
    %s24 = scalar_lea.vmem %s0, %s23
    %s25 = sadd.s32 0, 0
    %s26 = smul.u32 16, %s25
  $region5: #{scaling_model_forward.2} parent=0 // pred_fallthru
    _
  // Predicated region
  $region6: #{scaling_model_forward.2} parent=0 // pred_check
    _
  $region7: #{scaling_model_forward.2} parent=0 // pred_check_branch
    %28 = sbr.rel (0) target = $region9
  $region8: #{scaling_model_forward.2} parent=0 // pred_region
    %s29 = sadd.s32 0, 0
    %p30 = scmp.lt.s32.totalorder %s29, 0
    %s31 = scalar_select %p30, %s29, 0
    %s32 = scalar_lea.vmem %s1, %s31
    %s33 = sadd.s32 0, 0
  $region9: #{scaling_model_forward.2} parent=0 // pred_fallthru
    _
  // Predicated region
  $region10: #{scaling_model_forward.2} parent=0 // pred_check
    _
  $region11: #{scaling_model_forward.2} parent=0 // pred_check_branch
    %35 = sbr.rel (0) target = $region13
  $region12: #{scaling_model_forward.2} parent=0 // pred_region
    _
  $region13: #{scaling_model_forward.2} parent=0 // pred_fallthru
    _
  // Predicated region
  $region14: #{scaling_model_forward.2} parent=0 // pred_check
    _
  $region15: #{scaling_model_forward.2} parent=0 // pred_check_branch
    %37 = sbr.rel (0) target = $region17
  $region16: #{scaling_model_forward.2} parent=0 // pred_region
    _
  $region17: #{scaling_model_forward.2} parent=0 // pred_fallthru
    _
  // Predicated region
  $region18: #{scaling_model_forward.2} parent=0 // pred_check
    _
  $region19: #{scaling_model_forward.2} parent=0 // pred_check_branch
    %39 = sbr.rel (0) target = $region21
  $region20: #{scaling_model_forward.2} parent=0 // pred_region
    _
  $region21: #{scaling_model_forward.2} parent=0 // pred_fallthru
    _
  // Predicated region
  $region22: #{scaling_model_forward.2} parent=0 // pred_check
    _
  $region23: #{scaling_model_forward.2} parent=0 // pred_check_branch
    %41 = sbr.rel (0) target = $region25
  $region24: #{scaling_model_forward.2} parent=0 // pred_region
    _
  $region25: #{scaling_model_forward.2} parent=0 // pred_fallthru
    _
  // Predicated region
  $region26: #{scaling_model_forward.2} parent=0 // pred_check
    _
  $region27: #{scaling_model_forward.2} parent=0 // pred_check_branch
    %43 = sbr.rel (0) target = $region29
  $region28: #{scaling_model_forward.2} parent=0 // pred_region
    _
  $region29: #{scaling_model_forward.2} parent=0 // pred_fallthru
    _
  // Predicated region
  $region30: #{scaling_model_forward.2} parent=0 // pred_check
    _
  $region31: #{scaling_model_forward.2} parent=0 // pred_check_branch
    %45 = sbr.rel (0) target = $region33
  $region32: #{scaling_model_forward.2} parent=0 // pred_region
    _
  $region33: #{scaling_model_forward.2} parent=0 // pred_fallthru
    _
  // Predicated region
  $region34: #{scaling_model_forward.2} parent=0 // pred_check
    _
  $region35: #{scaling_model_forward.2} parent=0 // pred_check_branch
    %47 = sbr.rel (0) target = $region37
  $region36: #{scaling_model_forward.2} parent=0 // pred_region
    _
  $region37: #{scaling_model_forward.2} parent=0 // pred_fallthru
    _
  // Predicated region
  $region38: #{scaling_model_forward.2} parent=0 // pred_check
    _
  $region39: #{scaling_model_forward.2} parent=0 // pred_check_branch
    %49 = sbr.rel (0) target = $region41
  $region40: #{scaling_model_forward.2} parent=0 // pred_region
    _
  $region41: #{scaling_model_forward.2} parent=0 // pred_fallthru
    _
  // Predicated region
  $region42: #{scaling_model_forward.2} parent=0 // pred_check
    _
  $region43: #{scaling_model_forward.2} parent=0 // pred_check_branch
    %51 = sbr.rel (0) target = $region45
  $region44: #{scaling_model_forward.2} parent=0 // pred_region
    _
  $region45: #{scaling_model_forward.2} parent=0 // pred_fallthru
    _
  // Predicated region
  $region46: #{scaling_model_forward.2} parent=0 // pred_check
    _
  $region47: #{scaling_model_forward.2} parent=0 // pred_check_branch
    %53 = sbr.rel (0) target = $region49
  $region48: #{scaling_model_forward.2} parent=0 // pred_region
    _
  $region49: #{scaling_model_forward.2} parent=0 // pred_fallthru
    _
  %s54 = sadd.s32 0, 0
  %s55 = smul.u32 16, %s54
  %p56 = scmp.lt.s32.totalorder %s55, 15
  %s57 = scalar_select %p56, %s55, 15
  %s58 = smul.addr %s57, 4
  %s59 = scalar_lea.vmem %s0, %s58
  %s60 = sadd.s32 0, 0
  %p61 = scmp.lt.s32.totalorder %s60, 0
  %s62 = scalar_select %p61, %s60, 0
  %s63 = scalar_lea.vmem %s1, %s62
  %s64 = sadd.s32 0, 0
  %s65 = smul.u32 16, %s64
  %p66 = scmp.lt.s32.totalorder %s65, 15
  %s67 = scalar_select %p66, %s65, 15
  %s68 = smul.addr %s67, 4
  %s69 = scalar_lea.vmem %s0, %s68
  %s70 = sadd.s32 0, 0
  %s71 = smul.u32 16, %s70
  %s72 = sadd.s32 0, 0
  %p73 = scmp.lt.s32.totalorder %s72, 0
  %s74 = scalar_select %p73, %s72, 0
  %s75 = scalar_lea.vmem %s1, %s74
  %s76 = sadd.s32 0, 0
  %p78 = scmp.eq.s32.totalorder 0, 0
  // Predicated region
  $region50: #{scaling_model_forward.2} parent=0 // pred_check
    %p79 = pneg %p78
  $region51: #{scaling_model_forward.2} parent=0 // pred_check_branch
    %81 = sbr.rel (%p79) target = $region53
  $region52: #{scaling_model_forward.2} parent=0 // pred_region
    %82 = vst [vmem:[#allocation2] sm:$0xf] 0.0
  $region53: #{scaling_model_forward.2} parent=0 // pred_fallthru
    _
  %v83 = vld [vmem:[%s69] sm:$0xf]
  %v84 = vld [vmem:[%s69 + $0x4] sm:$0xf]
  %v85 = vld [vmem:[%s69 + $0x8] sm:$0xf]
  %v86 = vld [vmem:[%s69 + $0xc] sm:$0xf]
  %v87 = vld [vmem:[%s69 + $0x10] sm:$0xf]
  %v88 = vld [vmem:[%s69 + $0x14] sm:$0xf]
  %v89 = vld [vmem:[%s69 + $0x18] sm:$0xf]
  %v90 = vld [vmem:[%s69 + $0x1c] sm:$0xf]
  %v91 = vld [vmem:[%s69 + $0x20] sm:$0xf]
  %v92 = vld [vmem:[%s69 + $0x24] sm:$0xf]
  %v93 = vld [vmem:[%s69 + $0x28] sm:$0xf]
  %v94 = vld [vmem:[%s69 + $0x2c] sm:$0xf]
  %v95 = vld [vmem:[%s69 + $0x30] sm:$0xf]
  %v96 = vld [vmem:[%s69 + $0x34] sm:$0xf]
  %v97 = vld [vmem:[%s69 + $0x38] sm:$0xf]
  %v98 = vld [vmem:[%s69 + $0x3c] sm:$0xf]
  %v99 = vld [vmem:[%s2] sm:$0xf]
  %v100 = vld [vmem:[%s3] sm:$0x1]
  %v102 = vlaneseq
  %v103 = vshrl.u32 %v102, 7
  %v104 = vsub.s32 0, %v103
  %v105 = vrot.slane %v100, %v104
  %v123 = vunpack.c.l.b16 %v83
  %v124 = vunpack.c.l.b16 %v84
  %v125 = vunpack.c.l.b16 %v85
  %v126 = vunpack.c.l.b16 %v86
  %v127 = vunpack.c.l.b16 %v87
  %v128 = vunpack.c.l.b16 %v88
  %v129 = vunpack.c.l.b16 %v89
  %v130 = vunpack.c.l.b16 %v90
  %v131 = vunpack.c.l.b16 %v91
  %v132 = vunpack.c.l.b16 %v92
  %v133 = vunpack.c.l.b16 %v93
  %v134 = vunpack.c.l.b16 %v94
  %v135 = vunpack.c.l.b16 %v95
  %v136 = vunpack.c.l.b16 %v96
  %v137 = vunpack.c.l.b16 %v97
  %v138 = vunpack.c.l.b16 %v98
  %v139 = vpack.c.b16 %v124, %v123
  %v140 = vpack.c.b16 %v126, %v125
  %v141 = vpack.c.b16 %v128, %v127
  %v142 = vpack.c.b16 %v130, %v129
  %v143 = vpack.c.b16 %v132, %v131
  %v144 = vpack.c.b16 %v134, %v133
  %v145 = vpack.c.b16 %v136, %v135
  %v146 = vpack.c.b16 %v138, %v137
  %vm147 = vcmask 64512
  %v149 = vsel %vm147, %v139, 0
  %v152 = vsel %vm147, %v140, 0
  %v155 = vsel %vm147, %v141, 0
  %v158 = vsel %vm147, %v142, 0
  %v161 = vsel %vm147, %v143, 0
  %v164 = vsel %vm147, %v144, 0
  %v167 = vsel %vm147, %v145, 0
  %v170 = vsel %vm147, %v146, 0
  %vm172 = vcmask 1043456
  %v174 = vsel %vm172, %v99, 0
  %176 = vmatprep.subr.bf16.mxu0 0
  %177 = vmatpush1.bf16.msra.mxu0 %v174
  %178 = vmatprep.subr.bf16.mxu0 0
  %179 = vmatpush1.bf16.msra.mxu0 0
  %180 = vmatprep.subr.bf16.mxu0 0
  %181 = vmatpush1.bf16.msra.mxu0 0
  %182 = vmatprep.subr.bf16.mxu0 0
  %183 = vmatpush1.bf16.msra.mxu0 0
  %184 = vmatprep.subr.bf16.mxu0 0
  %185 = vmatpush1.bf16.msra.mxu0 0
  %186 = vmatprep.subr.bf16.mxu0 0
  %187 = vmatpush1.bf16.msra.mxu0 0
  %188 = vmatprep.subr.bf16.mxu0 0
  %189 = vmatpush1.bf16.msra.mxu0 0
  %190 = vmatprep.subr.bf16.mxu0 0
  %191 = vmatpush1.bf16.msra.mxu0 0
  %192 = vmatprep.subr.bf16.mxu0 0
  %193 = vmatpush1.bf16.msra.mxu0 0
  %194 = vmatprep.subr.bf16.mxu0 0
  %195 = vmatpush1.bf16.msra.mxu0 0
  %196 = vmatprep.subr.bf16.mxu0 0
  %197 = vmatpush1.bf16.msra.mxu0 0
  %198 = vmatprep.subr.bf16.mxu0 0
  %199 = vmatpush1.bf16.msra.mxu0 0
  %200 = vmatprep.subr.bf16.mxu0 0
  %201 = vmatpush1.bf16.msra.mxu0 0
  %202 = vmatprep.subr.bf16.mxu0 0
  %203 = vmatpush1.bf16.msra.mxu0 0
  %204 = vmatprep.subr.bf16.mxu0 0
  %205 = vmatpush1.bf16.msra.mxu0 0
  %206 = vmatprep.subr.bf16.mxu0 0
  %207 = vmatpush1.bf16.msra.mxu0 0
  %208 = vmatprep.mubr.bf16.mxu0 0
  %209 = vmatmul.mubr.bf16.gmra.mrb[0].mxu0 %v149
  %v210 = vpop.f32.mrb[0].mxu0
  %v211 = vadd.f32 %v105, %v210
  %v212 = vpop.f32.mrb[0].mxu0
  %v213 = vpop.f32.mrb[0].mxu0
  %v214 = vadd.f32 %v105, %v213
  %v215 = vpop.f32.mrb[0].mxu0
  %216 = vmatprep.mubr.bf16.mxu0 0
  %217 = vmatmul.mubr.bf16.gmra.mrb[0].mxu0 %v152
  %v218 = vpop.f32.mrb[0].mxu0
  %v219 = vadd.f32 %v105, %v218
  %v220 = vpop.f32.mrb[0].mxu0
  %v221 = vpop.f32.mrb[0].mxu0
  %v222 = vadd.f32 %v105, %v221
  %v223 = vpop.f32.mrb[0].mxu0
  %224 = vmatprep.mubr.bf16.mxu0 0
  %225 = vmatmul.mubr.bf16.gmra.mrb[0].mxu0 %v155
  %v226 = vpop.f32.mrb[0].mxu0
  %v227 = vadd.f32 %v105, %v226
  %v228 = vpop.f32.mrb[0].mxu0
  %v229 = vpop.f32.mrb[0].mxu0
  %v230 = vadd.f32 %v105, %v229
  %v231 = vpop.f32.mrb[0].mxu0
  %232 = vmatprep.mubr.bf16.mxu0 0
  %233 = vmatmul.mubr.bf16.gmra.mrb[0].mxu0 %v158
  %v234 = vpop.f32.mrb[0].mxu0
  %v235 = vadd.f32 %v105, %v234
  %v236 = vpop.f32.mrb[0].mxu0
  %v237 = vpop.f32.mrb[0].mxu0
  %v238 = vadd.f32 %v105, %v237
  %v239 = vpop.f32.mrb[0].mxu0
  %240 = vmatprep.mubr.bf16.mxu0 0
  %241 = vmatmul.mubr.bf16.gmra.mrb[0].mxu0 %v161
  %v242 = vpop.f32.mrb[0].mxu0
  %v243 = vadd.f32 %v105, %v242
  %v244 = vpop.f32.mrb[0].mxu0
  %v245 = vpop.f32.mrb[0].mxu0
  %v246 = vadd.f32 %v105, %v245
  %v247 = vpop.f32.mrb[0].mxu0
  %248 = vmatprep.mubr.bf16.mxu0 0
  %249 = vmatmul.mubr.bf16.gmra.mrb[0].mxu0 %v164
  %v250 = vpop.f32.mrb[0].mxu0
  %v251 = vadd.f32 %v105, %v250
  %v252 = vpop.f32.mrb[0].mxu0
  %v253 = vpop.f32.mrb[0].mxu0
  %v254 = vadd.f32 %v105, %v253
  %v255 = vpop.f32.mrb[0].mxu0
  %256 = vmatprep.mubr.bf16.mxu0 0
  %257 = vmatmul.mubr.bf16.gmra.mrb[0].mxu0 %v167
  %v258 = vpop.f32.mrb[0].mxu0
  %v259 = vadd.f32 %v105, %v258
  %v260 = vpop.f32.mrb[0].mxu0
  %v261 = vpop.f32.mrb[0].mxu0
  %v262 = vadd.f32 %v105, %v261
  %v263 = vpop.f32.mrb[0].mxu0
  %264 = vmatprep.mubr.bf16.mxu0 0
  %265 = vmatmul.mubr.bf16.gmra.mrb[0].mxu0 %v170
  %v266 = vpop.f32.mrb[0].mxu0
  %v267 = vadd.f32 %v105, %v266
  %v268 = vpop.f32.mrb[0].mxu0
  %v269 = vpop.f32.mrb[0].mxu0
  %v270 = vadd.f32 %v105, %v269
  %v271 = vpop.f32.mrb[0].mxu0
  %272 = vdwg.mxu0
  %v273 = vmax.f32 %v211, 0.0
  %v274 = vmax.f32 %v214, 0.0
  %v275 = vmax.f32 %v219, 0.0
  %v276 = vmax.f32 %v222, 0.0
  %v277 = vmax.f32 %v227, 0.0
  %v278 = vmax.f32 %v230, 0.0
  %v279 = vmax.f32 %v235, 0.0
  %v280 = vmax.f32 %v238, 0.0
  %v281 = vmax.f32 %v243, 0.0
  %v282 = vmax.f32 %v246, 0.0
  %v283 = vmax.f32 %v251, 0.0
  %v284 = vmax.f32 %v254, 0.0
  %v285 = vmax.f32 %v259, 0.0
  %v286 = vmax.f32 %v262, 0.0
  %v287 = vmax.f32 %v267, 0.0
  %v288 = vmax.f32 %v270, 0.0
  %v289 = vpack.c.bf16 %v274, %v273
  %v290 = vpack.c.bf16 %v276, %v275
  %v291 = vpack.c.bf16 %v278, %v277
  %v292 = vpack.c.bf16 %v280, %v279
  %v293 = vpack.c.bf16 %v282, %v281
  %v294 = vpack.c.bf16 %v284, %v283
  %v295 = vpack.c.bf16 %v286, %v285
  %v296 = vpack.c.bf16 %v288, %v287
  %v297 = vld [vmem:[%s4] sm:$0xf]
  %v298 = vld [vmem:[%s4 + $0x4] sm:$0xf]
  %v299 = vld [vmem:[%s4 + $0x8] sm:$0xf]
  %v300 = vld [vmem:[%s4 + $0xc] sm:$0xf]
  %v301 = vld [vmem:[%s4 + $0x10] sm:$0xf]
  %v302 = vld [vmem:[%s4 + $0x14] sm:$0xf]
  %v303 = vld [vmem:[%s4 + $0x18] sm:$0xf]
  %v304 = vld [vmem:[%s4 + $0x1c] sm:$0xf]
  %v305 = vld [vmem:[%s4 + $0x20] sm:$0xf]
  %v306 = vld [vmem:[%s4 + $0x24] sm:$0xf]
  %v307 = vld [vmem:[%s4 + $0x28] sm:$0xf]
  %v308 = vld [vmem:[%s4 + $0x2c] sm:$0xf]
  %v309 = vld [vmem:[%s4 + $0x30] sm:$0xf]
  %v310 = vld [vmem:[%s4 + $0x34] sm:$0xf]
  %v311 = vld [vmem:[%s4 + $0x38] sm:$0xf]
  %v312 = vld [vmem:[%s4 + $0x3c] sm:$0xf]
  %v313 = vld [vmem:[%s5] sm:$0x1]
  %v315 = vlaneseq
  %v316 = vshrl.u32 %v315, 7
  %v317 = vsub.s32 0, %v316
  %v318 = vrot.slane %v313, %v317
  %v336 = vunpack.c.l.b16 %v297
  %v337 = vunpack.c.l.b16 %v298
  %v338 = vunpack.c.l.b16 %v299
  %v339 = vunpack.c.l.b16 %v300
  %v340 = vunpack.c.l.b16 %v301
  %v341 = vunpack.c.l.b16 %v302
  %v342 = vunpack.c.l.b16 %v303
  %v343 = vunpack.c.l.b16 %v304
  %v344 = vunpack.c.l.b16 %v305
  %v345 = vunpack.c.l.b16 %v306
  %v346 = vunpack.c.l.b16 %v307
  %v347 = vunpack.c.l.b16 %v308
  %v348 = vunpack.c.l.b16 %v309
  %v349 = vunpack.c.l.b16 %v310
  %v350 = vunpack.c.l.b16 %v311
  %v351 = vunpack.c.l.b16 %v312
  %v352 = vpack.c.b16 %v337, %v336
  %v353 = vpack.c.b16 %v339, %v338
  %v354 = vpack.c.b16 %v341, %v340
  %v355 = vpack.c.b16 %v343, %v342
  %v356 = vpack.c.b16 %v345, %v344
  %v357 = vpack.c.b16 %v347, %v346
  %v358 = vpack.c.b16 %v349, %v348
  %v359 = vpack.c.b16 %v351, %v350
  %368 = vmatprep.subr.bf16.mxu0 0
  %369 = vmatpush1.bf16.msra.mxu0 %v352
  %370 = vmatprep.subr.bf16.mxu0 0
  %371 = vmatpush1.bf16.msra.mxu0 %v353
  %372 = vmatprep.subr.bf16.mxu0 0
  %373 = vmatpush1.bf16.msra.mxu0 %v354
  %374 = vmatprep.subr.bf16.mxu0 0
  %375 = vmatpush1.bf16.msra.mxu0 %v355
  %376 = vmatprep.subr.bf16.mxu0 0
  %377 = vmatpush1.bf16.msra.mxu0 %v356
  %378 = vmatprep.subr.bf16.mxu0 0
  %379 = vmatpush1.bf16.msra.mxu0 %v357
  %380 = vmatprep.subr.bf16.mxu0 0
  %381 = vmatpush1.bf16.msra.mxu0 %v358
  %382 = vmatprep.subr.bf16.mxu0 0
  %383 = vmatpush1.bf16.msra.mxu0 %v359
  %384 = vmatprep.subr.bf16.mxu0 0
  %385 = vmatpush1.bf16.msra.mxu0 0
  %386 = vmatprep.subr.bf16.mxu0 0
  %387 = vmatpush1.bf16.msra.mxu0 0
  %388 = vmatprep.subr.bf16.mxu0 0
  %389 = vmatpush1.bf16.msra.mxu0 0
  %390 = vmatprep.subr.bf16.mxu0 0
  %391 = vmatpush1.bf16.msra.mxu0 0
  %392 = vmatprep.subr.bf16.mxu0 0
  %393 = vmatpush1.bf16.msra.mxu0 0
  %394 = vmatprep.subr.bf16.mxu0 0
  %395 = vmatpush1.bf16.msra.mxu0 0
  %396 = vmatprep.subr.bf16.mxu0 0
  %397 = vmatpush1.bf16.msra.mxu0 0
  %398 = vmatprep.subr.bf16.mxu0 0
  %399 = vmatpush1.bf16.msra.mxu0 0
  %400 = vmatprep.mubr.bf16.mxu0 0
  %401 = vmatmul.mubr.bf16.gmra.mrb[0].mxu0 %v289
  %v402 = vpop.f32.mrb[0].mxu0
  %v403 = vadd.f32 %v318, %v402
  %v404 = vpop.f32.mrb[0].mxu0
  %v405 = vpop.f32.mrb[0].mxu0
  %v406 = vadd.f32 %v318, %v405
  %v407 = vpop.f32.mrb[0].mxu0
  %408 = vmatprep.mubr.bf16.mxu0 0
  %409 = vmatmul.mubr.bf16.gmra.mrb[0].mxu0 %v290
  %v410 = vpop.f32.mrb[0].mxu0
  %v411 = vadd.f32 %v318, %v410
  %v412 = vpop.f32.mrb[0].mxu0
  %v413 = vpop.f32.mrb[0].mxu0
  %v414 = vadd.f32 %v318, %v413
  %v415 = vpop.f32.mrb[0].mxu0
  %416 = vmatprep.mubr.bf16.mxu0 0
  %417 = vmatmul.mubr.bf16.gmra.mrb[0].mxu0 %v291
  %v418 = vpop.f32.mrb[0].mxu0
  %v419 = vadd.f32 %v318, %v418
  %v420 = vpop.f32.mrb[0].mxu0
  %v421 = vpop.f32.mrb[0].mxu0
  %v422 = vadd.f32 %v318, %v421
  %v423 = vpop.f32.mrb[0].mxu0
  %424 = vmatprep.mubr.bf16.mxu0 0
  %425 = vmatmul.mubr.bf16.gmra.mrb[0].mxu0 %v292
  %v426 = vpop.f32.mrb[0].mxu0
  %v427 = vadd.f32 %v318, %v426
  %v428 = vpop.f32.mrb[0].mxu0
  %v429 = vpop.f32.mrb[0].mxu0
  %v430 = vadd.f32 %v318, %v429
  %v431 = vpop.f32.mrb[0].mxu0
  %432 = vmatprep.mubr.bf16.mxu0 0
  %433 = vmatmul.mubr.bf16.gmra.mrb[0].mxu0 %v293
  %v434 = vpop.f32.mrb[0].mxu0
  %v435 = vadd.f32 %v318, %v434
  %v436 = vpop.f32.mrb[0].mxu0
  %v437 = vpop.f32.mrb[0].mxu0
  %v438 = vadd.f32 %v318, %v437
  %v439 = vpop.f32.mrb[0].mxu0
  %440 = vmatprep.mubr.bf16.mxu0 0
  %441 = vmatmul.mubr.bf16.gmra.mrb[0].mxu0 %v294
  %v442 = vpop.f32.mrb[0].mxu0
  %v443 = vadd.f32 %v318, %v442
  %v444 = vpop.f32.mrb[0].mxu0
  %v445 = vpop.f32.mrb[0].mxu0
  %v446 = vadd.f32 %v318, %v445
  %v447 = vpop.f32.mrb[0].mxu0
  %448 = vmatprep.mubr.bf16.mxu0 0
  %449 = vmatmul.mubr.bf16.gmra.mrb[0].mxu0 %v295
  %v450 = vpop.f32.mrb[0].mxu0
  %v451 = vadd.f32 %v318, %v450
  %v452 = vpop.f32.mrb[0].mxu0
  %v453 = vpop.f32.mrb[0].mxu0
  %v454 = vadd.f32 %v318, %v453
  %v455 = vpop.f32.mrb[0].mxu0
  %456 = vmatprep.mubr.bf16.mxu0 0
  %457 = vmatmul.mubr.bf16.gmra.mrb[0].mxu0 %v296
  %v458 = vpop.f32.mrb[0].mxu0
  %v459 = vadd.f32 %v318, %v458
  %v460 = vpop.f32.mrb[0].mxu0
  %v461 = vpop.f32.mrb[0].mxu0
  %v462 = vadd.f32 %v318, %v461
  %v463 = vpop.f32.mrb[0].mxu0
  %464 = vdwg.mxu0
  %v465 = vmax.f32 %v403, 0.0
  %v466 = vmax.f32 %v406, 0.0
  %v467 = vmax.f32 %v411, 0.0
  %v468 = vmax.f32 %v414, 0.0
  %v469 = vmax.f32 %v419, 0.0
  %v470 = vmax.f32 %v422, 0.0
  %v471 = vmax.f32 %v427, 0.0
  %v472 = vmax.f32 %v430, 0.0
  %v473 = vmax.f32 %v435, 0.0
  %v474 = vmax.f32 %v438, 0.0
  %v475 = vmax.f32 %v443, 0.0
  %v476 = vmax.f32 %v446, 0.0
  %v477 = vmax.f32 %v451, 0.0
  %v478 = vmax.f32 %v454, 0.0
  %v479 = vmax.f32 %v459, 0.0
  %v480 = vmax.f32 %v462, 0.0
  %v481 = vpack.c.bf16 %v466, %v465
  %v482 = vpack.c.bf16 %v468, %v467
  %v483 = vpack.c.bf16 %v470, %v469
  %v484 = vpack.c.bf16 %v472, %v471
  %v485 = vpack.c.bf16 %v474, %v473
  %v486 = vpack.c.bf16 %v476, %v475
  %v487 = vpack.c.bf16 %v478, %v477
  %v488 = vpack.c.bf16 %v480, %v479
  %v489 = vld [vmem:[%s6] sm:$0xf]
  %v490 = vld [vmem:[%s6 + $0x4] sm:$0xf]
  %v491 = vld [vmem:[%s6 + $0x8] sm:$0xf]
  %v492 = vld [vmem:[%s6 + $0xc] sm:$0xf]
  %v493 = vld [vmem:[%s6 + $0x10] sm:$0xf]
  %v494 = vld [vmem:[%s6 + $0x14] sm:$0xf]
  %v495 = vld [vmem:[%s6 + $0x18] sm:$0xf]
  %v496 = vld [vmem:[%s6 + $0x1c] sm:$0xf]
  %v497 = vld [vmem:[%s6 + $0x20] sm:$0xf]
  %v498 = vld [vmem:[%s6 + $0x24] sm:$0xf]
  %v499 = vld [vmem:[%s6 + $0x28] sm:$0xf]
  %v500 = vld [vmem:[%s6 + $0x2c] sm:$0xf]
  %v501 = vld [vmem:[%s6 + $0x30] sm:$0xf]
  %v502 = vld [vmem:[%s6 + $0x34] sm:$0xf]
  %v503 = vld [vmem:[%s6 + $0x38] sm:$0xf]
  %v504 = vld [vmem:[%s6 + $0x3c] sm:$0xf]
  %v505 = vld [vmem:[%s7] sm:$0x1]
  %v507 = vlaneseq
  %v508 = vshrl.u32 %v507, 7
  %v509 = vsub.s32 0, %v508
  %v510 = vrot.slane %v505, %v509
  %v528 = vunpack.c.l.b16 %v489
  %v529 = vunpack.c.l.b16 %v490
  %v530 = vunpack.c.l.b16 %v491
  %v531 = vunpack.c.l.b16 %v492
  %v532 = vunpack.c.l.b16 %v493
  %v533 = vunpack.c.l.b16 %v494
  %v534 = vunpack.c.l.b16 %v495
  %v535 = vunpack.c.l.b16 %v496
  %v536 = vunpack.c.l.b16 %v497
  %v537 = vunpack.c.l.b16 %v498
  %v538 = vunpack.c.l.b16 %v499
  %v539 = vunpack.c.l.b16 %v500
  %v540 = vunpack.c.l.b16 %v501
  %v541 = vunpack.c.l.b16 %v502
  %v542 = vunpack.c.l.b16 %v503
  %v543 = vunpack.c.l.b16 %v504
  %v544 = vpack.c.b16 %v529, %v528
  %v545 = vpack.c.b16 %v531, %v530
  %v546 = vpack.c.b16 %v533, %v532
  %v547 = vpack.c.b16 %v535, %v534
  %v548 = vpack.c.b16 %v537, %v536
  %v549 = vpack.c.b16 %v539, %v538
  %v550 = vpack.c.b16 %v541, %v540
  %v551 = vpack.c.b16 %v543, %v542
  %560 = vmatprep.subr.bf16.mxu0 0
  %561 = vmatpush1.bf16.msra.mxu0 %v544
  %562 = vmatprep.subr.bf16.mxu0 0
  %563 = vmatpush1.bf16.msra.mxu0 %v545
  %564 = vmatprep.subr.bf16.mxu0 0
  %565 = vmatpush1.bf16.msra.mxu0 %v546
  %566 = vmatprep.subr.bf16.mxu0 0
  %567 = vmatpush1.bf16.msra.mxu0 %v547
  %568 = vmatprep.subr.bf16.mxu0 0
  %569 = vmatpush1.bf16.msra.mxu0 %v548
  %570 = vmatprep.subr.bf16.mxu0 0
  %571 = vmatpush1.bf16.msra.mxu0 %v549
  %572 = vmatprep.subr.bf16.mxu0 0
  %573 = vmatpush1.bf16.msra.mxu0 %v550
  %574 = vmatprep.subr.bf16.mxu0 0
  %575 = vmatpush1.bf16.msra.mxu0 %v551
  %576 = vmatprep.subr.bf16.mxu0 0
  %577 = vmatpush1.bf16.msra.mxu0 0
  %578 = vmatprep.subr.bf16.mxu0 0
  %579 = vmatpush1.bf16.msra.mxu0 0
  %580 = vmatprep.subr.bf16.mxu0 0
  %581 = vmatpush1.bf16.msra.mxu0 0
  %582 = vmatprep.subr.bf16.mxu0 0
  %583 = vmatpush1.bf16.msra.mxu0 0
  %584 = vmatprep.subr.bf16.mxu0 0
  %585 = vmatpush1.bf16.msra.mxu0 0
  %586 = vmatprep.subr.bf16.mxu0 0
  %587 = vmatpush1.bf16.msra.mxu0 0
  %588 = vmatprep.subr.bf16.mxu0 0
  %589 = vmatpush1.bf16.msra.mxu0 0
  %590 = vmatprep.subr.bf16.mxu0 0
  %591 = vmatpush1.bf16.msra.mxu0 0
  %592 = vmatprep.mubr.bf16.mxu0 0
  %593 = vmatmul.mubr.bf16.gmra.mrb[0].mxu0 %v481
  %v594 = vpop.f32.mrb[0].mxu0
  %v595 = vadd.f32 %v510, %v594
  %v596 = vpop.f32.mrb[0].mxu0
  %v597 = vpop.f32.mrb[0].mxu0
  %v598 = vadd.f32 %v510, %v597
  %v599 = vpop.f32.mrb[0].mxu0
  %600 = vmatprep.mubr.bf16.mxu0 0
  %601 = vmatmul.mubr.bf16.gmra.mrb[0].mxu0 %v482
  %v602 = vpop.f32.mrb[0].mxu0
  %v603 = vadd.f32 %v510, %v602
  %v604 = vpop.f32.mrb[0].mxu0
  %v605 = vpop.f32.mrb[0].mxu0
  %v606 = vadd.f32 %v510, %v605
  %v607 = vpop.f32.mrb[0].mxu0
  %608 = vmatprep.mubr.bf16.mxu0 0
  %609 = vmatmul.mubr.bf16.gmra.mrb[0].mxu0 %v483
  %v610 = vpop.f32.mrb[0].mxu0
  %v611 = vadd.f32 %v510, %v610
  %v612 = vpop.f32.mrb[0].mxu0
  %v613 = vpop.f32.mrb[0].mxu0
  %v614 = vadd.f32 %v510, %v613
  %v615 = vpop.f32.mrb[0].mxu0
  %616 = vmatprep.mubr.bf16.mxu0 0
  %617 = vmatmul.mubr.bf16.gmra.mrb[0].mxu0 %v484
  %v618 = vpop.f32.mrb[0].mxu0
  %v619 = vadd.f32 %v510, %v618
  %v620 = vpop.f32.mrb[0].mxu0
  %v621 = vpop.f32.mrb[0].mxu0
  %v622 = vadd.f32 %v510, %v621
  %v623 = vpop.f32.mrb[0].mxu0
  %624 = vmatprep.mubr.bf16.mxu0 0
  %625 = vmatmul.mubr.bf16.gmra.mrb[0].mxu0 %v485
  %v626 = vpop.f32.mrb[0].mxu0
  %v627 = vadd.f32 %v510, %v626
  %v628 = vpop.f32.mrb[0].mxu0
  %v629 = vpop.f32.mrb[0].mxu0
  %v630 = vadd.f32 %v510, %v629
  %v631 = vpop.f32.mrb[0].mxu0
  %632 = vmatprep.mubr.bf16.mxu0 0
  %633 = vmatmul.mubr.bf16.gmra.mrb[0].mxu0 %v486
  %v634 = vpop.f32.mrb[0].mxu0
  %v635 = vadd.f32 %v510, %v634
  %v636 = vpop.f32.mrb[0].mxu0
  %v637 = vpop.f32.mrb[0].mxu0
  %v638 = vadd.f32 %v510, %v637
  %v639 = vpop.f32.mrb[0].mxu0
  %640 = vmatprep.mubr.bf16.mxu0 0
  %641 = vmatmul.mubr.bf16.gmra.mrb[0].mxu0 %v487
  %v642 = vpop.f32.mrb[0].mxu0
  %v643 = vadd.f32 %v510, %v642
  %v644 = vpop.f32.mrb[0].mxu0
  %v645 = vpop.f32.mrb[0].mxu0
  %v646 = vadd.f32 %v510, %v645
  %v647 = vpop.f32.mrb[0].mxu0
  %648 = vmatprep.mubr.bf16.mxu0 0
  %649 = vmatmul.mubr.bf16.gmra.mrb[0].mxu0 %v488
  %v650 = vpop.f32.mrb[0].mxu0
  %v651 = vadd.f32 %v510, %v650
  %v652 = vpop.f32.mrb[0].mxu0
  %v653 = vpop.f32.mrb[0].mxu0
  %v654 = vadd.f32 %v510, %v653
  %v655 = vpop.f32.mrb[0].mxu0
  %656 = vdwg.mxu0
  %v657 = vadd.f32 %v211, %v595
  %v658 = vadd.f32 %v214, %v598
  %v659 = vadd.f32 %v219, %v603
  %v660 = vadd.f32 %v222, %v606
  %v661 = vadd.f32 %v227, %v611
  %v662 = vadd.f32 %v230, %v614
  %v663 = vadd.f32 %v235, %v619
  %v664 = vadd.f32 %v238, %v622
  %v665 = vadd.f32 %v243, %v627
  %v666 = vadd.f32 %v246, %v630
  %v667 = vadd.f32 %v251, %v635
  %v668 = vadd.f32 %v254, %v638
  %v669 = vadd.f32 %v259, %v643
  %v670 = vadd.f32 %v262, %v646
  %v671 = vadd.f32 %v267, %v651
  %v672 = vadd.f32 %v270, %v654
  %v673 = vmax.f32 %v657, 0.0
  %v674 = vmax.f32 %v658, 0.0
  %v675 = vmax.f32 %v659, 0.0
  %v676 = vmax.f32 %v660, 0.0
  %v677 = vmax.f32 %v661, 0.0
  %v678 = vmax.f32 %v662, 0.0
  %v679 = vmax.f32 %v663, 0.0
  %v680 = vmax.f32 %v664, 0.0
  %v681 = vmax.f32 %v665, 0.0
  %v682 = vmax.f32 %v666, 0.0
  %v683 = vmax.f32 %v667, 0.0
  %v684 = vmax.f32 %v668, 0.0
  %v685 = vmax.f32 %v669, 0.0
  %v686 = vmax.f32 %v670, 0.0
  %v687 = vmax.f32 %v671, 0.0
  %v688 = vmax.f32 %v672, 0.0
  %v689 = vpack.c.bf16 %v674, %v673
  %v690 = vpack.c.bf16 %v676, %v675
  %v691 = vpack.c.bf16 %v678, %v677
  %v692 = vpack.c.bf16 %v680, %v679
  %v693 = vpack.c.bf16 %v682, %v681
  %v694 = vpack.c.bf16 %v684, %v683
  %v695 = vpack.c.bf16 %v686, %v685
  %v696 = vpack.c.bf16 %v688, %v687
  %v697 = vld [vmem:[%s8] sm:$0xf]
  %v698 = vld [vmem:[%s8 + $0x4] sm:$0xf]
  %v699 = vld [vmem:[%s8 + $0x8] sm:$0xf]
  %v700 = vld [vmem:[%s8 + $0xc] sm:$0xf]
  %v701 = vld [vmem:[%s8 + $0x10] sm:$0xf]
  %v702 = vld [vmem:[%s8 + $0x14] sm:$0xf]
  %v703 = vld [vmem:[%s8 + $0x18] sm:$0xf]
  %v704 = vld [vmem:[%s8 + $0x1c] sm:$0xf]
  %v705 = vld [vmem:[%s8 + $0x20] sm:$0xf]
  %v706 = vld [vmem:[%s8 + $0x24] sm:$0xf]
  %v707 = vld [vmem:[%s8 + $0x28] sm:$0xf]
  %v708 = vld [vmem:[%s8 + $0x2c] sm:$0xf]
  %v709 = vld [vmem:[%s8 + $0x30] sm:$0xf]
  %v710 = vld [vmem:[%s8 + $0x34] sm:$0xf]
  %v711 = vld [vmem:[%s8 + $0x38] sm:$0xf]
  %v712 = vld [vmem:[%s8 + $0x3c] sm:$0xf]
  %v713 = vld [vmem:[%s9] sm:$0x1]
  %v715 = vlaneseq
  %v716 = vshrl.u32 %v715, 7
  %v717 = vsub.s32 0, %v716
  %v718 = vrot.slane %v713, %v717
  %v736 = vunpack.c.l.b16 %v697
  %v737 = vunpack.c.l.b16 %v698
  %v738 = vunpack.c.l.b16 %v699
  %v739 = vunpack.c.l.b16 %v700
  %v740 = vunpack.c.l.b16 %v701
  %v741 = vunpack.c.l.b16 %v702
  %v742 = vunpack.c.l.b16 %v703
  %v743 = vunpack.c.l.b16 %v704
  %v744 = vunpack.c.l.b16 %v705
  %v745 = vunpack.c.l.b16 %v706
  %v746 = vunpack.c.l.b16 %v707
  %v747 = vunpack.c.l.b16 %v708
  %v748 = vunpack.c.l.b16 %v709
  %v749 = vunpack.c.l.b16 %v710
  %v750 = vunpack.c.l.b16 %v711
  %v751 = vunpack.c.l.b16 %v712
  %v752 = vpack.c.b16 %v737, %v736
  %v753 = vpack.c.b16 %v739, %v738
  %v754 = vpack.c.b16 %v741, %v740
  %v755 = vpack.c.b16 %v743, %v742
  %v756 = vpack.c.b16 %v745, %v744
  %v757 = vpack.c.b16 %v747, %v746
  %v758 = vpack.c.b16 %v749, %v748
  %v759 = vpack.c.b16 %v751, %v750
  %768 = vmatprep.subr.bf16.mxu0 0
  %769 = vmatpush1.bf16.msra.mxu0 %v752
  %770 = vmatprep.subr.bf16.mxu0 0
  %771 = vmatpush1.bf16.msra.mxu0 %v753
  %772 = vmatprep.subr.bf16.mxu0 0
  %773 = vmatpush1.bf16.msra.mxu0 %v754
  %774 = vmatprep.subr.bf16.mxu0 0
  %775 = vmatpush1.bf16.msra.mxu0 %v755
  %776 = vmatprep.subr.bf16.mxu0 0
  %777 = vmatpush1.bf16.msra.mxu0 %v756
  %778 = vmatprep.subr.bf16.mxu0 0
  %779 = vmatpush1.bf16.msra.mxu0 %v757
  %780 = vmatprep.subr.bf16.mxu0 0
  %781 = vmatpush1.bf16.msra.mxu0 %v758
  %782 = vmatprep.subr.bf16.mxu0 0
  %783 = vmatpush1.bf16.msra.mxu0 %v759
  %784 = vmatprep.subr.bf16.mxu0 0
  %785 = vmatpush1.bf16.msra.mxu0 0
  %786 = vmatprep.subr.bf16.mxu0 0
  %787 = vmatpush1.bf16.msra.mxu0 0
  %788 = vmatprep.subr.bf16.mxu0 0
  %789 = vmatpush1.bf16.msra.mxu0 0
  %790 = vmatprep.subr.bf16.mxu0 0
  %791 = vmatpush1.bf16.msra.mxu0 0
  %792 = vmatprep.subr.bf16.mxu0 0
  %793 = vmatpush1.bf16.msra.mxu0 0
  %794 = vmatprep.subr.bf16.mxu0 0
  %795 = vmatpush1.bf16.msra.mxu0 0
  %796 = vmatprep.subr.bf16.mxu0 0
  %797 = vmatpush1.bf16.msra.mxu0 0
  %798 = vmatprep.subr.bf16.mxu0 0
  %799 = vmatpush1.bf16.msra.mxu0 0
  %800 = vmatprep.mubr.bf16.mxu0 0
  %801 = vmatmul.mubr.bf16.gmra.mrb[0].mxu0 %v689
  %v802 = vpop.f32.mrb[0].mxu0
  %v803 = vadd.f32 %v718, %v802
  %v804 = vpop.f32.mrb[0].mxu0
  %v805 = vpop.f32.mrb[0].mxu0
  %v806 = vadd.f32 %v718, %v805
  %v807 = vpop.f32.mrb[0].mxu0
  %808 = vmatprep.mubr.bf16.mxu0 0
  %809 = vmatmul.mubr.bf16.gmra.mrb[0].mxu0 %v690
  %v810 = vpop.f32.mrb[0].mxu0
  %v811 = vadd.f32 %v718, %v810
  %v812 = vpop.f32.mrb[0].mxu0
  %v813 = vpop.f32.mrb[0].mxu0
  %v814 = vadd.f32 %v718, %v813
  %v815 = vpop.f32.mrb[0].mxu0
  %816 = vmatprep.mubr.bf16.mxu0 0
  %817 = vmatmul.mubr.bf16.gmra.mrb[0].mxu0 %v691
  %v818 = vpop.f32.mrb[0].mxu0
  %v819 = vadd.f32 %v718, %v818
  %v820 = vpop.f32.mrb[0].mxu0
  %v821 = vpop.f32.mrb[0].mxu0
  %v822 = vadd.f32 %v718, %v821
  %v823 = vpop.f32.mrb[0].mxu0
  %824 = vmatprep.mubr.bf16.mxu0 0
  %825 = vmatmul.mubr.bf16.gmra.mrb[0].mxu0 %v692
  %v826 = vpop.f32.mrb[0].mxu0
  %v827 = vadd.f32 %v718, %v826
  %v828 = vpop.f32.mrb[0].mxu0
  %v829 = vpop.f32.mrb[0].mxu0
  %v830 = vadd.f32 %v718, %v829
  %v831 = vpop.f32.mrb[0].mxu0
  %832 = vmatprep.mubr.bf16.mxu0 0
  %833 = vmatmul.mubr.bf16.gmra.mrb[0].mxu0 %v693
  %v834 = vpop.f32.mrb[0].mxu0
  %v835 = vadd.f32 %v718, %v834
  %v836 = vpop.f32.mrb[0].mxu0
  %v837 = vpop.f32.mrb[0].mxu0
  %v838 = vadd.f32 %v718, %v837
  %v839 = vpop.f32.mrb[0].mxu0
  %840 = vmatprep.mubr.bf16.mxu0 0
  %841 = vmatmul.mubr.bf16.gmra.mrb[0].mxu0 %v694
  %v842 = vpop.f32.mrb[0].mxu0
  %v843 = vadd.f32 %v718, %v842
  %v844 = vpop.f32.mrb[0].mxu0
  %v845 = vpop.f32.mrb[0].mxu0
  %v846 = vadd.f32 %v718, %v845
  %v847 = vpop.f32.mrb[0].mxu0
  %848 = vmatprep.mubr.bf16.mxu0 0
  %849 = vmatmul.mubr.bf16.gmra.mrb[0].mxu0 %v695
  %v850 = vpop.f32.mrb[0].mxu0
  %v851 = vadd.f32 %v718, %v850
  %v852 = vpop.f32.mrb[0].mxu0
  %v853 = vpop.f32.mrb[0].mxu0
  %v854 = vadd.f32 %v718, %v853
  %v855 = vpop.f32.mrb[0].mxu0
  %856 = vmatprep.mubr.bf16.mxu0 0
  %857 = vmatmul.mubr.bf16.gmra.mrb[0].mxu0 %v696
  %v858 = vpop.f32.mrb[0].mxu0
  %v859 = vadd.f32 %v718, %v858
  %v860 = vpop.f32.mrb[0].mxu0
  %v861 = vpop.f32.mrb[0].mxu0
  %v862 = vadd.f32 %v718, %v861
  %v863 = vpop.f32.mrb[0].mxu0
  %864 = vdwg.mxu0
  %v865 = vmax.f32 %v803, 0.0
  %v866 = vmax.f32 %v806, 0.0
  %v867 = vmax.f32 %v811, 0.0
  %v868 = vmax.f32 %v814, 0.0
  %v869 = vmax.f32 %v819, 0.0
  %v870 = vmax.f32 %v822, 0.0
  %v871 = vmax.f32 %v827, 0.0
  %v872 = vmax.f32 %v830, 0.0
  %v873 = vmax.f32 %v835, 0.0
  %v874 = vmax.f32 %v838, 0.0
  %v875 = vmax.f32 %v843, 0.0
  %v876 = vmax.f32 %v846, 0.0
  %v877 = vmax.f32 %v851, 0.0
  %v878 = vmax.f32 %v854, 0.0
  %v879 = vmax.f32 %v859, 0.0
  %v880 = vmax.f32 %v862, 0.0
  %v881 = vpack.c.bf16 %v866, %v865
  %v882 = vpack.c.bf16 %v868, %v867
  %v883 = vpack.c.bf16 %v870, %v869
  %v884 = vpack.c.bf16 %v872, %v871
  %v885 = vpack.c.bf16 %v874, %v873
  %v886 = vpack.c.bf16 %v876, %v875
  %v887 = vpack.c.bf16 %v878, %v877
  %v888 = vpack.c.bf16 %v880, %v879
  %v889 = vld [vmem:[%s10] sm:$0xf]
  %v890 = vld [vmem:[%s10 + $0x4] sm:$0xf]
  %v891 = vld [vmem:[%s10 + $0x8] sm:$0xf]
  %v892 = vld [vmem:[%s10 + $0xc] sm:$0xf]
  %v893 = vld [vmem:[%s10 + $0x10] sm:$0xf]
  %v894 = vld [vmem:[%s10 + $0x14] sm:$0xf]
  %v895 = vld [vmem:[%s10 + $0x18] sm:$0xf]
  %v896 = vld [vmem:[%s10 + $0x1c] sm:$0xf]
  %v897 = vld [vmem:[%s10 + $0x20] sm:$0xf]
  %v898 = vld [vmem:[%s10 + $0x24] sm:$0xf]
  %v899 = vld [vmem:[%s10 + $0x28] sm:$0xf]
  %v900 = vld [vmem:[%s10 + $0x2c] sm:$0xf]
  %v901 = vld [vmem:[%s10 + $0x30] sm:$0xf]
  %v902 = vld [vmem:[%s10 + $0x34] sm:$0xf]
  %v903 = vld [vmem:[%s10 + $0x38] sm:$0xf]
  %v904 = vld [vmem:[%s10 + $0x3c] sm:$0xf]
  %v905 = vld [vmem:[%s11] sm:$0x1]
  %v907 = vlaneseq
  %v908 = vshrl.u32 %v907, 7
  %v909 = vsub.s32 0, %v908
  %v910 = vrot.slane %v905, %v909
  %v928 = vunpack.c.l.b16 %v889
  %v929 = vunpack.c.l.b16 %v890
  %v930 = vunpack.c.l.b16 %v891
  %v931 = vunpack.c.l.b16 %v892
  %v932 = vunpack.c.l.b16 %v893
  %v933 = vunpack.c.l.b16 %v894
  %v934 = vunpack.c.l.b16 %v895
  %v935 = vunpack.c.l.b16 %v896
  %v936 = vunpack.c.l.b16 %v897
  %v937 = vunpack.c.l.b16 %v898
  %v938 = vunpack.c.l.b16 %v899
  %v939 = vunpack.c.l.b16 %v900
  %v940 = vunpack.c.l.b16 %v901
  %v941 = vunpack.c.l.b16 %v902
  %v942 = vunpack.c.l.b16 %v903
  %v943 = vunpack.c.l.b16 %v904
  %v944 = vpack.c.b16 %v929, %v928
  %v945 = vpack.c.b16 %v931, %v930
  %v946 = vpack.c.b16 %v933, %v932
  %v947 = vpack.c.b16 %v935, %v934
  %v948 = vpack.c.b16 %v937, %v936
  %v949 = vpack.c.b16 %v939, %v938
  %v950 = vpack.c.b16 %v941, %v940
  %v951 = vpack.c.b16 %v943, %v942
  %960 = vmatprep.subr.bf16.mxu0 0
  %961 = vmatpush1.bf16.msra.mxu0 %v944
  %962 = vmatprep.subr.bf16.mxu0 0
  %963 = vmatpush1.bf16.msra.mxu0 %v945
  %964 = vmatprep.subr.bf16.mxu0 0
  %965 = vmatpush1.bf16.msra.mxu0 %v946
  %966 = vmatprep.subr.bf16.mxu0 0
  %967 = vmatpush1.bf16.msra.mxu0 %v947
  %968 = vmatprep.subr.bf16.mxu0 0
  %969 = vmatpush1.bf16.msra.mxu0 %v948
  %970 = vmatprep.subr.bf16.mxu0 0
  %971 = vmatpush1.bf16.msra.mxu0 %v949
  %972 = vmatprep.subr.bf16.mxu0 0
  %973 = vmatpush1.bf16.msra.mxu0 %v950
  %974 = vmatprep.subr.bf16.mxu0 0
  %975 = vmatpush1.bf16.msra.mxu0 %v951
  %976 = vmatprep.subr.bf16.mxu0 0
  %977 = vmatpush1.bf16.msra.mxu0 0
  %978 = vmatprep.subr.bf16.mxu0 0
  %979 = vmatpush1.bf16.msra.mxu0 0
  %980 = vmatprep.subr.bf16.mxu0 0
  %981 = vmatpush1.bf16.msra.mxu0 0
  %982 = vmatprep.subr.bf16.mxu0 0
  %983 = vmatpush1.bf16.msra.mxu0 0
  %984 = vmatprep.subr.bf16.mxu0 0
  %985 = vmatpush1.bf16.msra.mxu0 0
  %986 = vmatprep.subr.bf16.mxu0 0
  %987 = vmatpush1.bf16.msra.mxu0 0
  %988 = vmatprep.subr.bf16.mxu0 0
  %989 = vmatpush1.bf16.msra.mxu0 0
  %990 = vmatprep.subr.bf16.mxu0 0
  %991 = vmatpush1.bf16.msra.mxu0 0
  %992 = vmatprep.mubr.bf16.mxu0 0
  %993 = vmatmul.mubr.bf16.gmra.mrb[0].mxu0 %v881
  %v994 = vpop.f32.mrb[0].mxu0
  %v995 = vadd.f32 %v910, %v994
  %v996 = vpop.f32.mrb[0].mxu0
  %v997 = vpop.f32.mrb[0].mxu0
  %v998 = vadd.f32 %v910, %v997
  %v999 = vpop.f32.mrb[0].mxu0
  %1000 = vmatprep.mubr.bf16.mxu0 0
  %1001 = vmatmul.mubr.bf16.gmra.mrb[0].mxu0 %v882
  %v1002 = vpop.f32.mrb[0].mxu0
  %v1003 = vadd.f32 %v910, %v1002
  %v1004 = vpop.f32.mrb[0].mxu0
  %v1005 = vpop.f32.mrb[0].mxu0
  %v1006 = vadd.f32 %v910, %v1005
  %v1007 = vpop.f32.mrb[0].mxu0
  %1008 = vmatprep.mubr.bf16.mxu0 0
  %1009 = vmatmul.mubr.bf16.gmra.mrb[0].mxu0 %v883
  %v1010 = vpop.f32.mrb[0].mxu0
  %v1011 = vadd.f32 %v910, %v1010
  %v1012 = vpop.f32.mrb[0].mxu0
  %v1013 = vpop.f32.mrb[0].mxu0
  %v1014 = vadd.f32 %v910, %v1013
  %v1015 = vpop.f32.mrb[0].mxu0
  %1016 = vmatprep.mubr.bf16.mxu0 0
  %1017 = vmatmul.mubr.bf16.gmra.mrb[0].mxu0 %v884
  %v1018 = vpop.f32.mrb[0].mxu0
  %v1019 = vadd.f32 %v910, %v1018
  %v1020 = vpop.f32.mrb[0].mxu0
  %v1021 = vpop.f32.mrb[0].mxu0
  %v1022 = vadd.f32 %v910, %v1021
  %v1023 = vpop.f32.mrb[0].mxu0
  %1024 = vmatprep.mubr.bf16.mxu0 0
  %1025 = vmatmul.mubr.bf16.gmra.mrb[0].mxu0 %v885
  %v1026 = vpop.f32.mrb[0].mxu0
  %v1027 = vadd.f32 %v910, %v1026
  %v1028 = vpop.f32.mrb[0].mxu0
  %v1029 = vpop.f32.mrb[0].mxu0
  %v1030 = vadd.f32 %v910, %v1029
  %v1031 = vpop.f32.mrb[0].mxu0
  %1032 = vmatprep.mubr.bf16.mxu0 0
  %1033 = vmatmul.mubr.bf16.gmra.mrb[0].mxu0 %v886
  %v1034 = vpop.f32.mrb[0].mxu0
  %v1035 = vadd.f32 %v910, %v1034
  %v1036 = vpop.f32.mrb[0].mxu0
  %v1037 = vpop.f32.mrb[0].mxu0
  %v1038 = vadd.f32 %v910, %v1037
  %v1039 = vpop.f32.mrb[0].mxu0
  %1040 = vmatprep.mubr.bf16.mxu0 0
  %1041 = vmatmul.mubr.bf16.gmra.mrb[0].mxu0 %v887
  %v1042 = vpop.f32.mrb[0].mxu0
  %v1043 = vadd.f32 %v910, %v1042
  %v1044 = vpop.f32.mrb[0].mxu0
  %v1045 = vpop.f32.mrb[0].mxu0
  %v1046 = vadd.f32 %v910, %v1045
  %v1047 = vpop.f32.mrb[0].mxu0
  %1048 = vmatprep.mubr.bf16.mxu0 0
  %1049 = vmatmul.mubr.bf16.gmra.mrb[0].mxu0 %v888
  %v1050 = vpop.f32.mrb[0].mxu0
  %v1051 = vadd.f32 %v910, %v1050
  %v1052 = vpop.f32.mrb[0].mxu0
  %v1053 = vpop.f32.mrb[0].mxu0
  %v1054 = vadd.f32 %v910, %v1053
  %v1055 = vpop.f32.mrb[0].mxu0
  %1056 = vdwg.mxu0
  %v1057 = vadd.f32 %v657, %v995
  %v1058 = vadd.f32 %v658, %v998
  %v1059 = vadd.f32 %v659, %v1003
  %v1060 = vadd.f32 %v660, %v1006
  %v1061 = vadd.f32 %v661, %v1011
  %v1062 = vadd.f32 %v662, %v1014
  %v1063 = vadd.f32 %v663, %v1019
  %v1064 = vadd.f32 %v664, %v1022
  %v1065 = vadd.f32 %v665, %v1027
  %v1066 = vadd.f32 %v666, %v1030
  %v1067 = vadd.f32 %v667, %v1035
  %v1068 = vadd.f32 %v668, %v1038
  %v1069 = vadd.f32 %v669, %v1043
  %v1070 = vadd.f32 %v670, %v1046
  %v1071 = vadd.f32 %v671, %v1051
  %v1072 = vadd.f32 %v672, %v1054
  %v1073 = vld [vmem:[%s75] sm:$0x1]
  %v1074 = vlaneseq
  %v1075 = vshrl.u32 %v1074, 7
  %v1076 = vlaneseq
  %v1077 = vshrl.u32 %v1076, 7
  %v1078 = vsub.s32 0, %v1077
  %v1079 = vrot.slane %v1073, %v1078
  %vm1080 = vcmp.eq.s32.totalorder %v1075, %v1079
  %v1081 = vsel %vm1080, 1, 0
  %v1082 = vcvt.s32.f32 %v1081
  %v1083 = vld [vmem:[#allocation2] sm:$0xf]
  %1084 = vmatprep.subr.mxu0 0.0
  %1085 = vmatpush1.msra.mxu0 %v1057
  %1086 = vmatprep.subr.mxu0 0.0
  %1087 = vmatpush1.msra.mxu0 %v1058
  %1088 = vmatprep.subr.mxu0 0.0
  %1089 = vmatpush1.msra.mxu0 %v1059
  %1090 = vmatprep.subr.mxu0 0.0
  %1091 = vmatpush1.msra.mxu0 %v1060
  %1092 = vmatprep.subr.mxu0 0.0
  %1093 = vmatpush1.msra.mxu0 %v1061
  %1094 = vmatprep.subr.mxu0 0.0
  %1095 = vmatpush1.msra.mxu0 %v1062
  %1096 = vmatprep.subr.mxu0 0.0
  %1097 = vmatpush1.msra.mxu0 %v1063
  %1098 = vmatprep.subr.mxu0 0.0
  %1099 = vmatpush1.msra.mxu0 %v1064
  %1100 = vmatprep.subr.mxu0 0.0
  %1101 = vmatpush1.msra.mxu0 %v1065
  %1102 = vmatprep.subr.mxu0 0.0
  %1103 = vmatpush1.msra.mxu0 %v1066
  %1104 = vmatprep.subr.mxu0 0.0
  %1105 = vmatpush1.msra.mxu0 %v1067
  %1106 = vmatprep.subr.mxu0 0.0
  %1107 = vmatpush1.msra.mxu0 %v1068
  %1108 = vmatprep.subr.mxu0 0.0
  %1109 = vmatpush1.msra.mxu0 %v1069
  %1110 = vmatprep.subr.mxu0 0.0
  %1111 = vmatpush1.msra.mxu0 %v1070
  %1112 = vmatprep.subr.mxu0 0.0
  %1113 = vmatpush1.msra.mxu0 %v1071
  %1114 = vmatprep.subr.mxu0 0.0
  %1115 = vmatpush1.msra.mxu0 %v1072
  %1116 = vmatprep.subr.mxu0 0.0
  %1117 = vmatpush1.msra.mxu0 0.0
  %1118 = vmatprep.subr.mxu0 0.0
  %1119 = vmatpush1.msra.mxu0 0.0
  %1120 = vmatprep.subr.mxu0 0.0
  %1121 = vmatpush1.msra.mxu0 0.0
  %1122 = vmatprep.subr.mxu0 0.0
  %1123 = vmatpush1.msra.mxu0 0.0
  %1124 = vmatprep.subr.mxu0 0.0
  %1125 = vmatpush1.msra.mxu0 0.0
  %1126 = vmatprep.subr.mxu0 0.0
  %1127 = vmatpush1.msra.mxu0 0.0
  %1128 = vmatprep.subr.mxu0 0.0
  %1129 = vmatpush1.msra.mxu0 0.0
  %1130 = vmatprep.subr.mxu0 0.0
  %1131 = vmatpush1.msra.mxu0 0.0
  %1132 = vmatprep.subr.mxu0 0.0
  %1133 = vmatpush1.msra.mxu0 0.0
  %1134 = vmatprep.subr.mxu0 0.0
  %1135 = vmatpush1.msra.mxu0 0.0
  %1136 = vmatprep.subr.mxu0 0.0
  %1137 = vmatpush1.msra.mxu0 0.0
  %1138 = vmatprep.subr.mxu0 0.0
  %1139 = vmatpush1.msra.mxu0 0.0
  %1140 = vmatprep.subr.mxu0 0.0
  %1141 = vmatpush1.msra.mxu0 0.0
  %1142 = vmatprep.subr.mxu0 0.0
  %1143 = vmatpush1.msra.mxu0 0.0
  %1144 = vmatprep.subr.mxu0 0.0
  %1145 = vmatpush1.msra.mxu0 0.0
  %1146 = vmatprep.subr.mxu0 0.0
  %1147 = vmatpush1.msra.mxu0 0.0
  %1148 = vmatprep.mubr.f32.mxu0 0.0
  %1149 = vmatmul.mubr.f32.gmra.mrb[0].mxu0 %v1082
  %v1150 = vpop.f32.mrb[0].mxu0
  %v1151 = vadd.f32 0.0, %v1150
  %v1152 = vpop.f32.mrb[0].mxu0
  %1153 = vdwg.mxu0
  %v1154 = vadd.f32 %v1083, %v1151
  %1155 = vst [vmem:[#allocation2] sm:$0xf] %v1154
  // Predicated region
  $region54: #{scaling_model_forward.2} parent=0 // pred_check
    %p1156 = pneg %p78
  $region55: #{scaling_model_forward.2} parent=0 // pred_check_branch
    %1158 = sbr.rel (%p1156) target = $region57
  $region56: #{scaling_model_forward.2} parent=0 // pred_region
    %v1159 = vld [vmem:[#allocation2] sm:$0xf]
    %1160 = vst [vmem:[%s12] sm:$0xf] %v1159
  $region57: #{scaling_model_forward.2} parent=0 // pred_fallthru
    _
  // Predicated region
  $region58: #{scaling_model_forward.2} parent=0 // pred_check
    _
  $region59: #{scaling_model_forward.2} parent=0 // pred_check_branch
    %1162 = sbr.rel (0) target = $region61
  $region60: #{scaling_model_forward.2} parent=0 // pred_region
    _
  $region61: #{scaling_model_forward.2} parent=0 // pred_fallthru
    _
  // Predicated region
  $region62: #{scaling_model_forward.2} parent=0 // pred_check
    _
  $region63: #{scaling_model_forward.2} parent=0 // pred_check_branch
    %1164 = sbr.rel (0) target = $region65
  $region64: #{scaling_model_forward.2} parent=0 // pred_region
    _
  $region65: #{scaling_model_forward.2} parent=0 // pred_fallthru
    _

// kernel: scaling_model_forward.3
$region0: #{scaling_model_forward.3}
  #allocation0 [shape = 'u32[]', space=smem, size = 0x4, offset = 0x4, fixed_abs, tag = 'smem constant byte address 0x4 - core index']
  #allocation1 [shape = 'u32[144,128]{1,0:T(1,128)}', space=vmem, size = 0x12000, scoped, tag = 'internal scratch']
  #allocation2 [shape = 'f32[1,1]{1,0:T(1,128)S(1)}', space=vmem, size = 0x200, scoped, tag = 'scoped memory for scaling_model_forward.3']
  %s0 = inlined_call_operand.vmem [shape: f32[128,6], index: 0, kind: input, shape index: {}]
  %s1 = inlined_call_operand.vmem [shape: s32[1,128], index: 1, kind: input, shape index: {}]
  %s2 = inlined_call_operand.vmem [shape: f32[1,6], index: 2, kind: input, shape index: {}]
  %s3 = inlined_call_operand.vmem [shape: f32[8,1], index: 3, kind: input, shape index: {}]
  %s4 = inlined_call_operand.<no memory space> [shape: f32[1,1], index: 4, kind: input, shape index: {}]
  %s5 = inlined_call_operand.vmem [shape: f32[1,128], index: 5, kind: output, shape index: {}]
  %s6 = sld [smem:[#allocation0]]
  $region30: #{scaling_model_forward.3} parent=0
    _
  %s8 = ssub.s32 1, %s6
  %s9 = scalar_select 0, %s8, %s6
  %v10 = vstv %s4
  %11 = vst [vmem:[#allocation2] sm:$0x1] %v10
  // Predicated region
  $region2: #{scaling_model_forward.3} parent=0 // pred_check
    _
  $region3: #{scaling_model_forward.3} parent=0 // pred_check_branch
    %13 = sbr.rel (0) target = $region5
  $region4: #{scaling_model_forward.3} parent=0 // pred_region
    _
  $region5: #{scaling_model_forward.3} parent=0 // pred_fallthru
    _
  // Predicated region
  $region6: #{scaling_model_forward.3} parent=0 // pred_check
    _
  $region7: #{scaling_model_forward.3} parent=0 // pred_check_branch
    %15 = sbr.rel (0) target = $region9
  $region8: #{scaling_model_forward.3} parent=0 // pred_region
    _
  $region9: #{scaling_model_forward.3} parent=0 // pred_fallthru
    _
  // Predicated region
  $region10: #{scaling_model_forward.3} parent=0 // pred_check
    _
  $region11: #{scaling_model_forward.3} parent=0 // pred_check_branch
    %17 = sbr.rel (0) target = $region13
  $region12: #{scaling_model_forward.3} parent=0 // pred_region
    _
  $region13: #{scaling_model_forward.3} parent=0 // pred_fallthru
    _
  // Predicated region
  $region14: #{scaling_model_forward.3} parent=0 // pred_check
    _
  $region15: #{scaling_model_forward.3} parent=0 // pred_check_branch
    %19 = sbr.rel (0) target = $region17
  $region16: #{scaling_model_forward.3} parent=0 // pred_region
    _
  $region17: #{scaling_model_forward.3} parent=0 // pred_fallthru
    _
  // Predicated region
  $region18: #{scaling_model_forward.3} parent=0 // pred_check
    _
  $region19: #{scaling_model_forward.3} parent=0 // pred_check_branch
    %21 = sbr.rel (0) target = $region21
  $region20: #{scaling_model_forward.3} parent=0 // pred_region
    _
  $region21: #{scaling_model_forward.3} parent=0 // pred_fallthru
    _
  %v22 = vld [vmem:[%s2] sm:$0x1]
  %v23 = vld [vmem:[%s0] sm:$0xff]
  %v24 = vld [vmem:[%s0 + $0x8] sm:$0xff]
  %v25 = vld [vmem:[%s0 + $0x10] sm:$0xff]
  %v26 = vld [vmem:[%s0 + $0x18] sm:$0xff]
  %v27 = vld [vmem:[%s0 + $0x20] sm:$0xff]
  %v28 = vld [vmem:[%s0 + $0x28] sm:$0xff]
  %v29 = vld [vmem:[%s0 + $0x30] sm:$0xff]
  %v30 = vld [vmem:[%s0 + $0x38] sm:$0xff]
  %v31 = vld [vmem:[%s0 + $0x40] sm:$0xff]
  %v32 = vld [vmem:[%s0 + $0x48] sm:$0xff]
  %v33 = vld [vmem:[%s0 + $0x50] sm:$0xff]
  %v34 = vld [vmem:[%s0 + $0x58] sm:$0xff]
  %v35 = vld [vmem:[%s0 + $0x60] sm:$0xff]
  %v36 = vld [vmem:[%s0 + $0x68] sm:$0xff]
  %v37 = vld [vmem:[%s0 + $0x70] sm:$0xff]
  %v38 = vld [vmem:[%s0 + $0x78] sm:$0xff]
  %v39 = vld [vmem:[%s1] sm:$0x1]
  %v40 = vlaneseq
  %v41 = vshrl.u32 %v40, 7
  %v42 = vlaneseq
  %v43 = vshrl.u32 %v42, 7
  %v44 = vsub.s32 0, %v43
  %v45 = vrot.slane %v39, %v44
  %vm46 = vcmp.eq.s32.totalorder %v41, %v45
  %v47 = vsel %vm46, 1, 0
  %v48 = vcvt.s32.f32 %v47
  %v49 = vld [vmem:[%s3] sm:$0xff]
  %51 = vset.pattern.permute.xlu0 0
  %52 = vperm.xlu0 %51, %v49
  %v53 = vpop.permute.xlu0 %52
  %v55 = vmul.f32 %v48, %v53
  %v56 = vrot.slane %v55, 4
  %v57 = vadd.f32 %v55, %v56
  %v58 = vrot.slane %v57, 2
  %v59 = vadd.f32 %v57, %v58
  %v60 = vrot.slane %v59, 1
  %v61 = vadd.f32 %v59, %v60
  %vm62 = vcmask 48128
  %v64 = vsel %vm62, %v22, 0
  %v67 = vsel %vm62, %v23, 0
  %v70 = vsel %vm62, %v24, 0
  %v73 = vsel %vm62, %v25, 0
  %v76 = vsel %vm62, %v26, 0
  %v79 = vsel %vm62, %v27, 0
  %v82 = vsel %vm62, %v28, 0
  %v85 = vsel %vm62, %v29, 0
  %v88 = vsel %vm62, %v30, 0
  %v91 = vsel %vm62, %v31, 0
  %v94 = vsel %vm62, %v32, 0
  %v97 = vsel %vm62, %v33, 0
  %v100 = vsel %vm62, %v34, 0
  %v103 = vsel %vm62, %v35, 0
  %v106 = vsel %vm62, %v36, 0
  %v109 = vsel %vm62, %v37, 0
  %v112 = vsel %vm62, %v38, 0
  %114 = vmatprep.subr.mxu0 0.0
  %115 = vmatpush1.xpose.msra.mxu0 %v67
  %116 = vmatprep.subr.mxu0 0.0
  %117 = vmatpush1.xpose.msra.mxu0 %v70
  %118 = vmatprep.subr.mxu0 0.0
  %119 = vmatpush1.xpose.msra.mxu0 %v73
  %120 = vmatprep.subr.mxu0 0.0
  %121 = vmatpush1.xpose.msra.mxu0 %v76
  %122 = vmatprep.subr.mxu0 0.0
  %123 = vmatpush1.xpose.msra.mxu0 %v79
  %124 = vmatprep.subr.mxu0 0.0
  %125 = vmatpush1.xpose.msra.mxu0 %v82
  %126 = vmatprep.subr.mxu0 0.0
  %127 = vmatpush1.xpose.msra.mxu0 %v85
  %128 = vmatprep.subr.mxu0 0.0
  %129 = vmatpush1.xpose.msra.mxu0 %v88
  %130 = vmatprep.subr.mxu0 0.0
  %131 = vmatpush1.xpose.msra.mxu0 %v91
  %132 = vmatprep.subr.mxu0 0.0
  %133 = vmatpush1.xpose.msra.mxu0 %v94
  %134 = vmatprep.subr.mxu0 0.0
  %135 = vmatpush1.xpose.msra.mxu0 %v97
  %136 = vmatprep.subr.mxu0 0.0
  %137 = vmatpush1.xpose.msra.mxu0 %v100
  %138 = vmatprep.subr.mxu0 0.0
  %139 = vmatpush1.xpose.msra.mxu0 %v103
  %140 = vmatprep.subr.mxu0 0.0
  %141 = vmatpush1.xpose.msra.mxu0 %v106
  %142 = vmatprep.subr.mxu0 0.0
  %143 = vmatpush1.xpose.msra.mxu0 %v109
  %144 = vmatprep.subr.mxu0 0.0
  %145 = vmatpush1.xpose.msra.mxu0 %v112
  %146 = vmatprep.subr.mxu0 0.0
  %147 = vmatpush1.xpose.msra.mxu0 0.0
  %148 = vmatprep.subr.mxu0 0.0
  %149 = vmatpush1.xpose.msra.mxu0 0.0
  %150 = vmatprep.subr.mxu0 0.0
  %151 = vmatpush1.xpose.msra.mxu0 0.0
  %152 = vmatprep.subr.mxu0 0.0
  %153 = vmatpush1.xpose.msra.mxu0 0.0
  %154 = vmatprep.subr.mxu0 0.0
  %155 = vmatpush1.xpose.msra.mxu0 0.0
  %156 = vmatprep.subr.mxu0 0.0
  %157 = vmatpush1.xpose.msra.mxu0 0.0
  %158 = vmatprep.subr.mxu0 0.0
  %159 = vmatpush1.xpose.msra.mxu0 0.0
  %160 = vmatprep.subr.mxu0 0.0
  %161 = vmatpush1.xpose.msra.mxu0 0.0
  %162 = vmatprep.subr.mxu0 0.0
  %163 = vmatpush1.xpose.msra.mxu0 0.0
  %164 = vmatprep.subr.mxu0 0.0
  %165 = vmatpush1.xpose.msra.mxu0 0.0
  %166 = vmatprep.subr.mxu0 0.0
  %167 = vmatpush1.xpose.msra.mxu0 0.0
  %168 = vmatprep.subr.mxu0 0.0
  %169 = vmatpush1.xpose.msra.mxu0 0.0
  %170 = vmatprep.subr.mxu0 0.0
  %171 = vmatpush1.xpose.msra.mxu0 0.0
  %172 = vmatprep.subr.mxu0 0.0
  %173 = vmatpush1.xpose.msra.mxu0 0.0
  %174 = vmatprep.subr.mxu0 0.0
  %175 = vmatpush1.xpose.msra.mxu0 0.0
  %176 = vmatprep.subr.mxu0 0.0
  %177 = vmatpush1.xpose.msra.mxu0 0.0
  %178 = vmatprep.mubr.f32.mxu0 0.0
  %179 = vmatmul.mubr.f32.gmra.mrb[0].mxu0 %v64
  %v180 = vpop.f32.mrb[0].mxu0
  %v181 = vadd.f32 %v61, %v180
  %v182 = vpop.f32.mrb[0].mxu0
  %183 = vdwg.mxu0
  %v184 = vld [vmem:[#allocation2] sm:$0x1]
  %186 = vset.pattern.permute.xlu0 0
  %187 = vperm.xlu0 %186, %v184
  %v188 = vpop.permute.xlu0 %187
  %v190 = vlaneseq
  %v191 = vshrl.u32 %v190, 7
  %v192 = vsub.s32 0, %v191
  %v193 = vrot.slane %v188, %v192
  %v194 = vadd.f32 %v181, %v193
  %195 = vst [vmem:[%s5] sm:$0x1] %v194
  // Predicated region
  $region22: #{scaling_model_forward.3} parent=0 // pred_check
    _
  $region23: #{scaling_model_forward.3} parent=0 // pred_check_branch
    %197 = sbr.rel (0) target = $region25
  $region24: #{scaling_model_forward.3} parent=0 // pred_region
    _
  $region25: #{scaling_model_forward.3} parent=0 // pred_fallthru
    _
  // Predicated region
  $region26: #{scaling_model_forward.3} parent=0 // pred_check
    _
  $region27: #{scaling_model_forward.3} parent=0 // pred_check_branch
    %199 = sbr.rel (0) target = $region29
  $region28: #{scaling_model_forward.3} parent=0 // pred_region
    _
  $region29: #{scaling_model_forward.3} parent=0 // pred_fallthru
    _

</llo_original>
